<compile_context>
chip_gen: v6e
topology: v6e:2x2x1
jax: 0.10.0
libtpu: 0.0.40
codegen_flags: <defaults>
</compile_context>

<pallas_src>
import functools

import jax
import jax.numpy as jnp
from jax import lax
from jax.experimental import pallas as pl
from jax.experimental.pallas import tpu as pltpu

EPS = 1e-5            # InstanceNorm3d default eps
NEG_SLOPE = 0.01      # LeakyReLU default negative_slope


def _round_up(x, m):
    return (x + m - 1) // m * m


def _conv_in_lrelu_kernel(x_ref, w_ref, b_ref, g_ref, beta_ref, mask_ref,
                          o_ref, p_scr, *, offsets, n_valid):
    # x_ref:    (1, Cin, Lpp)   halo-padded, flattened input for this instance
    # w_ref:    (Cout, KPAD)    conv weight, tap-major / cin-minor, zero-padded K
    # b_ref:    (Cout, 1)       conv bias
    # g_ref:    (Cout, 1)       instance-norm gamma
    # beta_ref: (Cout, 1)       instance-norm beta
    # mask_ref: (1, Lpp)        1.0 where the padded-flat column is a real voxel
    # o_ref:    (1, Cout, Lpp)  lane-dense output (padded-flat layout)
    # p_scr:    (KPAD, Lpp)     VMEM scratch holding the im2col patch matrix
    cin = x_ref.shape[1]
    lpp = x_ref.shape[2]
    kpad = p_scr.shape[0]
    k_valid = cin * len(offsets)

    # Keep the K-padding rows zeroed every step (megacore-safe) so the padded
    # weight columns multiply exact zeros, never uninitialized VMEM.
    if kpad > k_valid:
        p_scr[pl.ds(k_valid, kpad - k_valid), :] = jnp.zeros(
            (kpad - k_valid, lpp), dtype=p_scr.dtype)

    # --- in-VMEM im2col: 27 lane-rolled copies of the padded input ---------
    # For tap offset `off`, rolled[:, i] = x[:, i + off] for every valid output
    # base i (no wrap reaches a valid base by construction).
    x = x_ref[0]                                             # (Cin, Lpp)
    for t, off in enumerate(offsets):
        xs = x if off == 0 else pltpu.roll(x, shift=lpp - off, axis=1)
        p_scr[pl.ds(t * cin, cin), :] = xs

    # --- conv as one MXU matmul: (Cout, KPAD) @ (KPAD, Lpp) ----------------
    acc = jnp.dot(w_ref[...], p_scr[...],
                  preferred_element_type=jnp.float32)        # (Cout, Lpp) f32
    acc = acc + b_ref[...]                                   # bias, lane bcast

    # --- InstanceNorm3d: masked single-pass stats over valid voxels --------
    m = mask_ref[...]                                        # (1, Lpp)
    inv_n = 1.0 / n_valid
    s1 = jnp.sum(acc * m, axis=-1, keepdims=True)            # (Cout, 1)
    s2 = jnp.sum(acc * acc * m, axis=-1, keepdims=True)      # (Cout, 1)
    mean = s1 * inv_n
    var = jnp.maximum(s2 * inv_n - mean * mean, 0.0)         # biased (PyTorch)
    scale = g_ref[...] * lax.rsqrt(var + EPS)                # (Cout, 1)
    shift = beta_ref[...] - mean * scale

    # --- affine + LeakyReLU, lane-dense store ------------------------------
    y = acc * scale + shift
    y = jnp.where(y >= 0, y, NEG_SLOPE * y)
    o_ref[0] = y.astype(o_ref.dtype)


def conv_block3d_pallas(x, weight, bias, gamma, beta):
    """x: (N, Cin, D, H, W); weight: (Cout, Cin, 3, 3, 3); bias/gamma/beta: (Cout,)."""
    N, Cin, D, H, W = x.shape
    Cout = weight.shape[0]
    Dp, Hp, Wp = D + 2, H + 2, W + 2
    Lp = Dp * Hp * Wp                 # padded-flat spatial length
    Lpp = _round_up(Lp, 128)          # lane-aligned (multiple of 128)
    L = D * H * W                     # number of valid output voxels
    K = Cin * 27
    KPAD = _round_up(K, 128)          # MXU-friendly contraction depth

    # --- glue: halo pad (cheap ~2x at 8^3, ->1x for big volumes) + flatten ---
    xp = jnp.pad(x, ((0, 0), (0, 0), (1, 1), (1, 1), (1, 1)))
    xf = xp.reshape(N, Cin, Lp)
    xf = jnp.pad(xf, ((0, 0), (0, 0), (0, Lpp - Lp))).astype(jnp.float32)

    # weight -> (Cout, KPAD), tap-major / cin-minor (matches scratch fill order)
    w2 = weight.transpose(0, 2, 3, 4, 1).reshape(Cout, K)
    w2 = jnp.pad(w2, ((0, 0), (0, KPAD - K))).astype(jnp.float32)

    # per-channel params as (Cout, 1) so they broadcast along lanes in-kernel
    b2 = bias.reshape(Cout, 1).astype(jnp.float32)
    g2 = gamma.reshape(Cout, 1).astype(jnp.float32)
    bt2 = beta.reshape(Cout, 1).astype(jnp.float32)

    # validity mask over padded-flat columns (1.0 iff column is a real voxel)
    idx = jnp.arange(Lpp)
    d_i = idx // (Hp * Wp)
    h_i = (idx // Wp) % Hp
    w_i = idx % Wp
    mask = ((idx < Lp) & (d_i < D) & (h_i < H) & (w_i < W))
    mask = mask.astype(jnp.float32).reshape(1, Lpp)

    # tap offsets in the padded-flat index space
    offsets = tuple(kd * Hp * Wp + kh * Wp + kw
                    for kd in range(3) for kh in range(3) for kw in range(3))

    kernel = functools.partial(_conv_in_lrelu_kernel, offsets=offsets, n_valid=L)

    out_p = pl.pallas_call(
        kernel,
        out_shape=jax.ShapeDtypeStruct((N, Cout, Lpp), jnp.float32),
        grid_spec=pltpu.PrefetchScalarGridSpec(
            num_scalar_prefetch=0,
            grid=(N,),
            in_specs=[
                pl.BlockSpec((1, Cin, Lpp), lambda n: (n, 0, 0)),
                # grid-invariant operands (constant block index -> VMEM resident)
                pl.BlockSpec((Cout, KPAD), lambda n: (0, 0)),
                pl.BlockSpec((Cout, 1), lambda n: (0, 0)),
                pl.BlockSpec((Cout, 1), lambda n: (0, 0)),
                pl.BlockSpec((Cout, 1), lambda n: (0, 0)),
                pl.BlockSpec((1, Lpp), lambda n: (0, 0)),
            ],
            out_specs=pl.BlockSpec((1, Cout, Lpp), lambda n: (n, 0, 0)),
            scratch_shapes=[pltpu.VMEM((KPAD, Lpp), jnp.float32)],
        ),
        compiler_params=pltpu.CompilerParams(
            dimension_semantics=("parallel",),
            vmem_limit_bytes=32 * 1024 * 1024,
        ),
    )(xf, w2, b2, g2, bt2, mask)

    # lane-dense (N, Cout, Lpp) -> drop halo columns -> NCDHW (no transpose)
    out = out_p[:, :, :Lp].reshape(N, Cout, Dp, Hp, Wp)[:, :, :D, :H, :W]
    return out.astype(x.dtype)


def conv_block3d_ref(x, weight, bias, gamma, beta):
    """Pure-JAX reference matching PyTorch semantics (NCDHW)."""
    y = lax.conv_general_dilated(
        x, weight, window_strides=(1, 1, 1), padding=((1, 1), (1, 1), (1, 1)),
        dimension_numbers=("NCDHW", "OIDHW", "NCDHW"))
    y = y + bias[None, :, None, None, None]
    mean = jnp.mean(y, axis=(2, 3, 4), keepdims=True)
    var = jnp.mean((y - mean) ** 2, axis=(2, 3, 4), keepdims=True)
    yhat = (y - mean) * lax.rsqrt(var + EPS)
    y = yhat * gamma[None, :, None, None, None] + beta[None, :, None, None, None]
    return jnp.where(y >= 0, y, NEG_SLOPE * y)


if __name__ == "__main__":
    N, Cin, Cout, D, H, W = 2, 4, 8, 8, 8, 8

    key = jax.random.PRNGKey(0)
    kx, kw, kb, kg, kbeta = jax.random.split(key, 5)

    x = jax.random.normal(kx, (N, Cin, D, H, W), dtype=jnp.float32)
    fan_in = Cin * 27
    weight = jax.random.normal(kw, (Cout, Cin, 3, 3, 3), dtype=jnp.float32) / jnp.sqrt(fan_in)
    bias = 0.1 * jax.random.normal(kb, (Cout,), dtype=jnp.float32)
    gamma = 1.0 + 0.1 * jax.random.normal(kg, (Cout,), dtype=jnp.float32)
    beta = 0.1 * jax.random.normal(kbeta, (Cout,), dtype=jnp.float32)

    fn = jax.jit(conv_block3d_pallas)
    out = fn(x, weight, bias, gamma, beta)
    jax.block_until_ready(out)

    ref = conv_block3d_ref(x, weight, bias, gamma, beta)
    assert out.shape == (N, Cout, D, H, W), out.shape
    assert jnp.allclose(out, ref, atol=1e-4, rtol=1e-4), float(jnp.max(jnp.abs(out - ref)))

    print("KERNEL_OK")
</pallas_src>

<mosaic_0001>
module attributes {stable_mosaic.version = 11 : i64} {
  func.func @_conv_in_lrelu_kernel(%arg0: i32, %arg1: memref<1x4x1024xf32, #tpu.memory_space<vmem>>, %arg2: memref<8x128xf32, #tpu.memory_space<vmem>>, %arg3: memref<8x1xf32, #tpu.memory_space<vmem>>, %arg4: memref<8x1xf32, #tpu.memory_space<vmem>>, %arg5: memref<8x1xf32, #tpu.memory_space<vmem>>, %arg6: memref<1x1024xf32, #tpu.memory_space<vmem>>, %arg7: memref<1x8x1024xf32, #tpu.memory_space<vmem>>, %arg8: memref<128x1024xf32, #tpu.memory_space<vmem>>) attributes {dimension_semantics = [#tpu.dimension_semantics<parallel>], iteration_bounds = array<i64: 2>, scalar_prefetch = 0 : i64, scratch_operands = 1 : i64, tpu.core_type = #tpu.core_type<tc>, window_params = [{transform_indices = @transform_0, window_bounds = array<i64: 1, 4, 1024>}, {pipeline_mode = #tpu.pipeline_mode<synchronous>, transform_indices = @transform_1, window_bounds = array<i64: 8, 128>}, {pipeline_mode = #tpu.pipeline_mode<synchronous>, transform_indices = @transform_2, window_bounds = array<i64: 8, 1>}, {pipeline_mode = #tpu.pipeline_mode<synchronous>, transform_indices = @transform_3, window_bounds = array<i64: 8, 1>}, {pipeline_mode = #tpu.pipeline_mode<synchronous>, transform_indices = @transform_4, window_bounds = array<i64: 8, 1>}, {pipeline_mode = #tpu.pipeline_mode<synchronous>, transform_indices = @transform_5, window_bounds = array<i64: 1, 1024>}, {transform_indices = @transform_6, window_bounds = array<i64: 1, 8, 1024>}]} {
    %cst = arith.constant 0.000000e+00 : f32
    %0 = vector.broadcast %cst : f32 to vector<20x1024xf32>
    %c108 = arith.constant 108 : index
    %c0 = arith.constant 0 : index
    %1 = vector.load %arg8[%c108, %c0] : memref<128x1024xf32, #tpu.memory_space<vmem>>, vector<20x1024xf32>
    tpu.vector_store %arg8[%c108, %c0], %0 {strides = array<i32>} : memref<128x1024xf32, #tpu.memory_space<vmem>>, vector<20x1024xf32>,
    %c0_0 = arith.constant 0 : index
    %c0_1 = arith.constant 0 : index
    %c0_2 = arith.constant 0 : index
    %2 = vector.load %arg1[%c0_0, %c0_1, %c0_2] : memref<1x4x1024xf32, #tpu.memory_space<vmem>>, vector<1x4x1024xf32>
    %3 = vector.shape_cast %2 : vector<1x4x1024xf32> to vector<4x1024xf32>
    %c0_3 = arith.constant 0 : index
    %c0_4 = arith.constant 0 : index
    %4 = vector.load %arg8[%c0_3, %c0_4] : memref<128x1024xf32, #tpu.memory_space<vmem>>, vector<4x1024xf32>
    tpu.vector_store %arg8[%c0_3, %c0_4], %3 {strides = array<i32>} : memref<128x1024xf32, #tpu.memory_space<vmem>>, vector<4x1024xf32>,
    %c1023_i32 = arith.constant 1023 : i32
    %5 = tpu.dynamic_rotate %3 by %c1023_i32 dim 1 : vector<4x1024xf32>, i32 -> vector<4x1024xf32>
    %c4 = arith.constant 4 : index
    %c0_5 = arith.constant 0 : index
    %6 = vector.load %arg8[%c4, %c0_5] : memref<128x1024xf32, #tpu.memory_space<vmem>>, vector<4x1024xf32>
    tpu.vector_store %arg8[%c4, %c0_5], %5 {strides = array<i32>} : memref<128x1024xf32, #tpu.memory_space<vmem>>, vector<4x1024xf32>,
    %c1022_i32 = arith.constant 1022 : i32
    %7 = tpu.dynamic_rotate %3 by %c1022_i32 dim 1 : vector<4x1024xf32>, i32 -> vector<4x1024xf32>
    %c8 = arith.constant 8 : index
    %c0_6 = arith.constant 0 : index
    %8 = vector.load %arg8[%c8, %c0_6] : memref<128x1024xf32, #tpu.memory_space<vmem>>, vector<4x1024xf32>
    tpu.vector_store %arg8[%c8, %c0_6], %7 {strides = array<i32>} : memref<128x1024xf32, #tpu.memory_space<vmem>>, vector<4x1024xf32>,
    %c1014_i32 = arith.constant 1014 : i32
    %9 = tpu.dynamic_rotate %3 by %c1014_i32 dim 1 : vector<4x1024xf32>, i32 -> vector<4x1024xf32>
    %c12 = arith.constant 12 : index
    %c0_7 = arith.constant 0 : index
    %10 = vector.load %arg8[%c12, %c0_7] : memref<128x1024xf32, #tpu.memory_space<vmem>>, vector<4x1024xf32>
    tpu.vector_store %arg8[%c12, %c0_7], %9 {strides = array<i32>} : memref<128x1024xf32, #tpu.memory_space<vmem>>, vector<4x1024xf32>,
    %c1013_i32 = arith.constant 1013 : i32
    %11 = tpu.dynamic_rotate %3 by %c1013_i32 dim 1 : vector<4x1024xf32>, i32 -> vector<4x1024xf32>
    %c16 = arith.constant 16 : index
    %c0_8 = arith.constant 0 : index
    %12 = vector.load %arg8[%c16, %c0_8] : memref<128x1024xf32, #tpu.memory_space<vmem>>, vector<4x1024xf32>
    tpu.vector_store %arg8[%c16, %c0_8], %11 {strides = array<i32>} : memref<128x1024xf32, #tpu.memory_space<vmem>>, vector<4x1024xf32>,
    %c1012_i32 = arith.constant 1012 : i32
    %13 = tpu.dynamic_rotate %3 by %c1012_i32 dim 1 : vector<4x1024xf32>, i32 -> vector<4x1024xf32>
    %c20 = arith.constant 20 : index
    %c0_9 = arith.constant 0 : index
    %14 = vector.load %arg8[%c20, %c0_9] : memref<128x1024xf32, #tpu.memory_space<vmem>>, vector<4x1024xf32>
    tpu.vector_store %arg8[%c20, %c0_9], %13 {strides = array<i32>} : memref<128x1024xf32, #tpu.memory_space<vmem>>, vector<4x1024xf32>,
    %c1004_i32 = arith.constant 1004 : i32
    %15 = tpu.dynamic_rotate %3 by %c1004_i32 dim 1 : vector<4x1024xf32>, i32 -> vector<4x1024xf32>
    %c24 = arith.constant 24 : index
    %c0_10 = arith.constant 0 : index
    %16 = vector.load %arg8[%c24, %c0_10] : memref<128x1024xf32, #tpu.memory_space<vmem>>, vector<4x1024xf32>
    tpu.vector_store %arg8[%c24, %c0_10], %15 {strides = array<i32>} : memref<128x1024xf32, #tpu.memory_space<vmem>>, vector<4x1024xf32>,
    %c1003_i32 = arith.constant 1003 : i32
    %17 = tpu.dynamic_rotate %3 by %c1003_i32 dim 1 : vector<4x1024xf32>, i32 -> vector<4x1024xf32>
    %c28 = arith.constant 28 : index
    %c0_11 = arith.constant 0 : index
    %18 = vector.load %arg8[%c28, %c0_11] : memref<128x1024xf32, #tpu.memory_space<vmem>>, vector<4x1024xf32>
    tpu.vector_store %arg8[%c28, %c0_11], %17 {strides = array<i32>} : memref<128x1024xf32, #tpu.memory_space<vmem>>, vector<4x1024xf32>,
    %c1002_i32 = arith.constant 1002 : i32
    %19 = tpu.dynamic_rotate %3 by %c1002_i32 dim 1 : vector<4x1024xf32>, i32 -> vector<4x1024xf32>
    %c32 = arith.constant 32 : index
    %c0_12 = arith.constant 0 : index
    %20 = vector.load %arg8[%c32, %c0_12] : memref<128x1024xf32, #tpu.memory_space<vmem>>, vector<4x1024xf32>
    tpu.vector_store %arg8[%c32, %c0_12], %19 {strides = array<i32>} : memref<128x1024xf32, #tpu.memory_space<vmem>>, vector<4x1024xf32>,
    %c924_i32 = arith.constant 924 : i32
    %21 = tpu.dynamic_rotate %3 by %c924_i32 dim 1 : vector<4x1024xf32>, i32 -> vector<4x1024xf32>
    %c36 = arith.constant 36 : index
    %c0_13 = arith.constant 0 : index
    %22 = vector.load %arg8[%c36, %c0_13] : memref<128x1024xf32, #tpu.memory_space<vmem>>, vector<4x1024xf32>
    tpu.vector_store %arg8[%c36, %c0_13], %21 {strides = array<i32>} : memref<128x1024xf32, #tpu.memory_space<vmem>>, vector<4x1024xf32>,
    %c923_i32 = arith.constant 923 : i32
    %23 = tpu.dynamic_rotate %3 by %c923_i32 dim 1 : vector<4x1024xf32>, i32 -> vector<4x1024xf32>
    %c40 = arith.constant 40 : index
    %c0_14 = arith.constant 0 : index
    %24 = vector.load %arg8[%c40, %c0_14] : memref<128x1024xf32, #tpu.memory_space<vmem>>, vector<4x1024xf32>
    tpu.vector_store %arg8[%c40, %c0_14], %23 {strides = array<i32>} : memref<128x1024xf32, #tpu.memory_space<vmem>>, vector<4x1024xf32>,
    %c922_i32 = arith.constant 922 : i32
    %25 = tpu.dynamic_rotate %3 by %c922_i32 dim 1 : vector<4x1024xf32>, i32 -> vector<4x1024xf32>
    %c44 = arith.constant 44 : index
    %c0_15 = arith.constant 0 : index
    %26 = vector.load %arg8[%c44, %c0_15] : memref<128x1024xf32, #tpu.memory_space<vmem>>, vector<4x1024xf32>
    tpu.vector_store %arg8[%c44, %c0_15], %25 {strides = array<i32>} : memref<128x1024xf32, #tpu.memory_space<vmem>>, vector<4x1024xf32>,
    %c914_i32 = arith.constant 914 : i32
    %27 = tpu.dynamic_rotate %3 by %c914_i32 dim 1 : vector<4x1024xf32>, i32 -> vector<4x1024xf32>
    %c48 = arith.constant 48 : index
    %c0_16 = arith.constant 0 : index
    %28 = vector.load %arg8[%c48, %c0_16] : memref<128x1024xf32, #tpu.memory_space<vmem>>, vector<4x1024xf32>
    tpu.vector_store %arg8[%c48, %c0_16], %27 {strides = array<i32>} : memref<128x1024xf32, #tpu.memory_space<vmem>>, vector<4x1024xf32>,
    %c913_i32 = arith.constant 913 : i32
    %29 = tpu.dynamic_rotate %3 by %c913_i32 dim 1 : vector<4x1024xf32>, i32 -> vector<4x1024xf32>
    %c52 = arith.constant 52 : index
    %c0_17 = arith.constant 0 : index
    %30 = vector.load %arg8[%c52, %c0_17] : memref<128x1024xf32, #tpu.memory_space<vmem>>, vector<4x1024xf32>
    tpu.vector_store %arg8[%c52, %c0_17], %29 {strides = array<i32>} : memref<128x1024xf32, #tpu.memory_space<vmem>>, vector<4x1024xf32>,
    %c912_i32 = arith.constant 912 : i32
    %31 = tpu.dynamic_rotate %3 by %c912_i32 dim 1 : vector<4x1024xf32>, i32 -> vector<4x1024xf32>
    %c56 = arith.constant 56 : index
    %c0_18 = arith.constant 0 : index
    %32 = vector.load %arg8[%c56, %c0_18] : memref<128x1024xf32, #tpu.memory_space<vmem>>, vector<4x1024xf32>
    tpu.vector_store %arg8[%c56, %c0_18], %31 {strides = array<i32>} : memref<128x1024xf32, #tpu.memory_space<vmem>>, vector<4x1024xf32>,
    %c904_i32 = arith.constant 904 : i32
    %33 = tpu.dynamic_rotate %3 by %c904_i32 dim 1 : vector<4x1024xf32>, i32 -> vector<4x1024xf32>
    %c60 = arith.constant 60 : index
    %c0_19 = arith.constant 0 : index
    %34 = vector.load %arg8[%c60, %c0_19] : memref<128x1024xf32, #tpu.memory_space<vmem>>, vector<4x1024xf32>
    tpu.vector_store %arg8[%c60, %c0_19], %33 {strides = array<i32>} : memref<128x1024xf32, #tpu.memory_space<vmem>>, vector<4x1024xf32>,
    %c903_i32 = arith.constant 903 : i32
    %35 = tpu.dynamic_rotate %3 by %c903_i32 dim 1 : vector<4x1024xf32>, i32 -> vector<4x1024xf32>
    %c64 = arith.constant 64 : index
    %c0_20 = arith.constant 0 : index
    %36 = vector.load %arg8[%c64, %c0_20] : memref<128x1024xf32, #tpu.memory_space<vmem>>, vector<4x1024xf32>
    tpu.vector_store %arg8[%c64, %c0_20], %35 {strides = array<i32>} : memref<128x1024xf32, #tpu.memory_space<vmem>>, vector<4x1024xf32>,
    %c902_i32 = arith.constant 902 : i32
    %37 = tpu.dynamic_rotate %3 by %c902_i32 dim 1 : vector<4x1024xf32>, i32 -> vector<4x1024xf32>
    %c68 = arith.constant 68 : index
    %c0_21 = arith.constant 0 : index
    %38 = vector.load %arg8[%c68, %c0_21] : memref<128x1024xf32, #tpu.memory_space<vmem>>, vector<4x1024xf32>
    tpu.vector_store %arg8[%c68, %c0_21], %37 {strides = array<i32>} : memref<128x1024xf32, #tpu.memory_space<vmem>>, vector<4x1024xf32>,
    %c824_i32 = arith.constant 824 : i32
    %39 = tpu.dynamic_rotate %3 by %c824_i32 dim 1 : vector<4x1024xf32>, i32 -> vector<4x1024xf32>
    %c72 = arith.constant 72 : index
    %c0_22 = arith.constant 0 : index
    %40 = vector.load %arg8[%c72, %c0_22] : memref<128x1024xf32, #tpu.memory_space<vmem>>, vector<4x1024xf32>
    tpu.vector_store %arg8[%c72, %c0_22], %39 {strides = array<i32>} : memref<128x1024xf32, #tpu.memory_space<vmem>>, vector<4x1024xf32>,
    %c823_i32 = arith.constant 823 : i32
    %41 = tpu.dynamic_rotate %3 by %c823_i32 dim 1 : vector<4x1024xf32>, i32 -> vector<4x1024xf32>
    %c76 = arith.constant 76 : index
    %c0_23 = arith.constant 0 : index
    %42 = vector.load %arg8[%c76, %c0_23] : memref<128x1024xf32, #tpu.memory_space<vmem>>, vector<4x1024xf32>
    tpu.vector_store %arg8[%c76, %c0_23], %41 {strides = array<i32>} : memref<128x1024xf32, #tpu.memory_space<vmem>>, vector<4x1024xf32>,
    %c822_i32 = arith.constant 822 : i32
    %43 = tpu.dynamic_rotate %3 by %c822_i32 dim 1 : vector<4x1024xf32>, i32 -> vector<4x1024xf32>
    %c80 = arith.constant 80 : index
    %c0_24 = arith.constant 0 : index
    %44 = vector.load %arg8[%c80, %c0_24] : memref<128x1024xf32, #tpu.memory_space<vmem>>, vector<4x1024xf32>
    tpu.vector_store %arg8[%c80, %c0_24], %43 {strides = array<i32>} : memref<128x1024xf32, #tpu.memory_space<vmem>>, vector<4x1024xf32>,
    %c814_i32 = arith.constant 814 : i32
    %45 = tpu.dynamic_rotate %3 by %c814_i32 dim 1 : vector<4x1024xf32>, i32 -> vector<4x1024xf32>
    %c84 = arith.constant 84 : index
    %c0_25 = arith.constant 0 : index
    %46 = vector.load %arg8[%c84, %c0_25] : memref<128x1024xf32, #tpu.memory_space<vmem>>, vector<4x1024xf32>
    tpu.vector_store %arg8[%c84, %c0_25], %45 {strides = array<i32>} : memref<128x1024xf32, #tpu.memory_space<vmem>>, vector<4x1024xf32>,
    %c813_i32 = arith.constant 813 : i32
    %47 = tpu.dynamic_rotate %3 by %c813_i32 dim 1 : vector<4x1024xf32>, i32 -> vector<4x1024xf32>
    %c88 = arith.constant 88 : index
    %c0_26 = arith.constant 0 : index
    %48 = vector.load %arg8[%c88, %c0_26] : memref<128x1024xf32, #tpu.memory_space<vmem>>, vector<4x1024xf32>
    tpu.vector_store %arg8[%c88, %c0_26], %47 {strides = array<i32>} : memref<128x1024xf32, #tpu.memory_space<vmem>>, vector<4x1024xf32>,
    %c812_i32 = arith.constant 812 : i32
    %49 = tpu.dynamic_rotate %3 by %c812_i32 dim 1 : vector<4x1024xf32>, i32 -> vector<4x1024xf32>
    %c92 = arith.constant 92 : index
    %c0_27 = arith.constant 0 : index
    %50 = vector.load %arg8[%c92, %c0_27] : memref<128x1024xf32, #tpu.memory_space<vmem>>, vector<4x1024xf32>
    tpu.vector_store %arg8[%c92, %c0_27], %49 {strides = array<i32>} : memref<128x1024xf32, #tpu.memory_space<vmem>>, vector<4x1024xf32>,
    %c804_i32 = arith.constant 804 : i32
    %51 = tpu.dynamic_rotate %3 by %c804_i32 dim 1 : vector<4x1024xf32>, i32 -> vector<4x1024xf32>
    %c96 = arith.constant 96 : index
    %c0_28 = arith.constant 0 : index
    %52 = vector.load %arg8[%c96, %c0_28] : memref<128x1024xf32, #tpu.memory_space<vmem>>, vector<4x1024xf32>
    tpu.vector_store %arg8[%c96, %c0_28], %51 {strides = array<i32>} : memref<128x1024xf32, #tpu.memory_space<vmem>>, vector<4x1024xf32>,
    %c803_i32 = arith.constant 803 : i32
    %53 = tpu.dynamic_rotate %3 by %c803_i32 dim 1 : vector<4x1024xf32>, i32 -> vector<4x1024xf32>
    %c100 = arith.constant 100 : index
    %c0_29 = arith.constant 0 : index
    %54 = vector.load %arg8[%c100, %c0_29] : memref<128x1024xf32, #tpu.memory_space<vmem>>, vector<4x1024xf32>
    tpu.vector_store %arg8[%c100, %c0_29], %53 {strides = array<i32>} : memref<128x1024xf32, #tpu.memory_space<vmem>>, vector<4x1024xf32>,
    %c802_i32 = arith.constant 802 : i32
    %55 = tpu.dynamic_rotate %3 by %c802_i32 dim 1 : vector<4x1024xf32>, i32 -> vector<4x1024xf32>
    %c104 = arith.constant 104 : index
    %c0_30 = arith.constant 0 : index
    %56 = vector.load %arg8[%c104, %c0_30] : memref<128x1024xf32, #tpu.memory_space<vmem>>, vector<4x1024xf32>
    tpu.vector_store %arg8[%c104, %c0_30], %55 {strides = array<i32>} : memref<128x1024xf32, #tpu.memory_space<vmem>>, vector<4x1024xf32>,
    %c0_31 = arith.constant 0 : index
    %c0_32 = arith.constant 0 : index
    %57 = vector.load %arg2[%c0_31, %c0_32] : memref<8x128xf32, #tpu.memory_space<vmem>>, vector<8x128xf32>
    %c0_33 = arith.constant 0 : index
    %c0_34 = arith.constant 0 : index
    %58 = vector.load %arg8[%c0_33, %c0_34] : memref<128x1024xf32, #tpu.memory_space<vmem>>, vector<128x1024xf32>
    %cst_35 = arith.constant dense<0.000000e+00> : vector<8x1024xf32>
    %59 = tpu.matmul %57, %58, %cst_35 {dimension_numbers = #tpu.dot_dimension_numbers<[1], [0], [0], [1], [0, 0, 1, 1], [], []>} : vector<8x128xf32>, vector<128x1024xf32>, vector<8x1024xf32> -> vector<8x1024xf32>
    %c0_36 = arith.constant 0 : index
    %c0_37 = arith.constant 0 : index
    %60 = vector.load %arg3[%c0_36, %c0_37] : memref<8x1xf32, #tpu.memory_space<vmem>>, vector<8x1xf32>
    %61 = vector.broadcast %60 : vector<8x1xf32> to vector<8x1024xf32>
    %62 = arith.addf %59, %61 : vector<8x1024xf32>
    %c0_38 = arith.constant 0 : index
    %c0_39 = arith.constant 0 : index
    %63 = vector.load %arg6[%c0_38, %c0_39] : memref<1x1024xf32, #tpu.memory_space<vmem>>, vector<1x1024xf32>
    %64 = vector.broadcast %63 : vector<1x1024xf32> to vector<8x1024xf32>
    %65 = arith.mulf %62, %64 : vector<8x1024xf32>
    %cst_40 = arith.constant dense<0.000000e+00> : vector<8xf32>
    %66 = vector.multi_reduction <add>, %65, %cst_40 [1] : vector<8x1024xf32> to vector<8xf32>
    %67 = vector.shape_cast %66 : vector<8xf32> to vector<8x1xf32>
    %68 = arith.mulf %62, %62 : vector<8x1024xf32>
    %69 = vector.broadcast %63 : vector<1x1024xf32> to vector<8x1024xf32>
    %70 = arith.mulf %68, %69 : vector<8x1024xf32>
    %cst_41 = arith.constant dense<0.000000e+00> : vector<8xf32>
    %71 = vector.multi_reduction <add>, %70, %cst_41 [1] : vector<8x1024xf32> to vector<8xf32>
    %72 = vector.shape_cast %71 : vector<8xf32> to vector<8x1xf32>
    %cst_42 = arith.constant 0.001953125 : f32
    %73 = vector.broadcast %cst_42 : f32 to vector<8x1xf32>
    %74 = arith.mulf %67, %73 : vector<8x1xf32>
    %cst_43 = arith.constant 0.001953125 : f32
    %75 = vector.broadcast %cst_43 : f32 to vector<8x1xf32>
    %76 = arith.mulf %72, %75 : vector<8x1xf32>
    %77 = arith.mulf %74, %74 : vector<8x1xf32>
    %78 = arith.subf %76, %77 : vector<8x1xf32>
    %cst_44 = arith.constant 0.000000e+00 : f32
    %79 = vector.broadcast %cst_44 : f32 to vector<8x1xf32>
    %80 = arith.maximumf %78, %79 : vector<8x1xf32>
    %c0_45 = arith.constant 0 : index
    %c0_46 = arith.constant 0 : index
    %81 = vector.load %arg4[%c0_45, %c0_46] : memref<8x1xf32, #tpu.memory_space<vmem>>, vector<8x1xf32>
    %cst_47 = arith.constant 9.99999974E-6 : f32
    %82 = vector.broadcast %cst_47 : f32 to vector<8x1xf32>
    %83 = arith.addf %80, %82 : vector<8x1xf32>
    %84 = math.rsqrt %83 : vector<8x1xf32>
    %85 = arith.mulf %81, %84 : vector<8x1xf32>
    %c0_48 = arith.constant 0 : index
    %c0_49 = arith.constant 0 : index
    %86 = vector.load %arg5[%c0_48, %c0_49] : memref<8x1xf32, #tpu.memory_space<vmem>>, vector<8x1xf32>
    %87 = arith.mulf %74, %85 : vector<8x1xf32>
    %88 = arith.subf %86, %87 : vector<8x1xf32>
    %89 = vector.broadcast %85 : vector<8x1xf32> to vector<8x1024xf32>
    %90 = arith.mulf %62, %89 : vector<8x1024xf32>
    %91 = vector.broadcast %88 : vector<8x1xf32> to vector<8x1024xf32>
    %92 = arith.addf %90, %91 : vector<8x1024xf32>
    %cst_50 = arith.constant 0.000000e+00 : f32
    %93 = vector.broadcast %cst_50 : f32 to vector<8x1024xf32>
    %94 = arith.cmpf oge, %92, %93 : vector<8x1024xf32>
    %cst_51 = arith.constant 0.00999999977 : f32
    %95 = vector.broadcast %cst_51 : f32 to vector<8x1024xf32>
    %96 = arith.mulf %95, %92 : vector<8x1024xf32>
    %97 = arith.select %94, %92, %96 : vector<8x1024xi1>, vector<8x1024xf32>
    %c0_52 = arith.constant 0 : index
    %c0_53 = arith.constant 0 : index
    %c0_54 = arith.constant 0 : index
    %98 = vector.load %arg7[%c0_52, %c0_53, %c0_54] : memref<1x8x1024xf32, #tpu.memory_space<vmem>>, vector<1x8x1024xf32>
    %99 = vector.shape_cast %98 : vector<1x8x1024xf32> to vector<8x1024xf32>
    %100 = vector.shape_cast %97 : vector<8x1024xf32> to vector<1x8x1024xf32>
    tpu.vector_store %arg7[%c0_52, %c0_53, %c0_54], %100 {strides = array<i32>} : memref<1x8x1024xf32, #tpu.memory_space<vmem>>, vector<1x8x1024xf32>,
    return
  }
  func.func @transform_0(%arg0: i32) -> (i32, i32, i32) {
    %c0_i32 = arith.constant 0 : i32
    %c0_i32_0 = arith.constant 0 : i32
    %c0_i32_1 = arith.constant 0 : i32
    return %arg0, %c0_i32, %c0_i32_0 : i32, i32, i32
  }
  func.func @transform_1(%arg0: i32) -> (i32, i32) {
    %c0_i32 = arith.constant 0 : i32
    %c0_i32_0 = arith.constant 0 : i32
    %c0_i32_1 = arith.constant 0 : i32
    return %c0_i32, %c0_i32_0 : i32, i32
  }
  func.func @transform_2(%arg0: i32) -> (i32, i32) {
    %c0_i32 = arith.constant 0 : i32
    %c0_i32_0 = arith.constant 0 : i32
    %c0_i32_1 = arith.constant 0 : i32
    return %c0_i32, %c0_i32_0 : i32, i32
  }
  func.func @transform_3(%arg0: i32) -> (i32, i32) {
    %c0_i32 = arith.constant 0 : i32
    %c0_i32_0 = arith.constant 0 : i32
    %c0_i32_1 = arith.constant 0 : i32
    return %c0_i32, %c0_i32_0 : i32, i32
  }
  func.func @transform_4(%arg0: i32) -> (i32, i32) {
    %c0_i32 = arith.constant 0 : i32
    %c0_i32_0 = arith.constant 0 : i32
    %c0_i32_1 = arith.constant 0 : i32
    return %c0_i32, %c0_i32_0 : i32, i32
  }
  func.func @transform_5(%arg0: i32) -> (i32, i32) {
    %c0_i32 = arith.constant 0 : i32
    %c0_i32_0 = arith.constant 0 : i32
    %c0_i32_1 = arith.constant 0 : i32
    return %c0_i32, %c0_i32_0 : i32, i32
  }
  func.func @transform_6(%arg0: i32) -> (i32, i32, i32) {
    %c0_i32 = arith.constant 0 : i32
    %c0_i32_0 = arith.constant 0 : i32
    %c0_i32_1 = arith.constant 0 : i32
    return %arg0, %c0_i32, %c0_i32_0 : i32, i32, i32
  }
}

</mosaic_0001>

<llo_original>
// kernel: conv_block3d_pallas.1
$region0: #{conv_block3d_pallas.1}
  #allocation0 [shape = 'u32[]', space=smem, size = 0x4, offset = 0x4, fixed_abs, tag = 'smem constant byte address 0x4 - core index']
  #allocation1 [shape = 'u32[144,128]{1,0:T(1,128)}', space=vmem, size = 0x12000, scoped, tag = 'internal scratch']
  #allocation2 [shape = 'f32[128,1024]{1,0:T(8,128)}', space=vmem, size = 0x80000, scoped, tag = 'scratch operand']
  %s0 = inlined_call_operand.vmem [shape: f32[2,4,1024], index: 0, kind: input, shape index: {}]
  %s1 = inlined_call_operand.vmem [shape: f32[8,128], index: 1, kind: input, shape index: {}]
  %s2 = inlined_call_operand.vmem [shape: f32[8,1], index: 2, kind: input, shape index: {}]
  %s3 = inlined_call_operand.vmem [shape: f32[8,1], index: 3, kind: input, shape index: {}]
  %s4 = inlined_call_operand.vmem [shape: f32[8,1], index: 4, kind: input, shape index: {}]
  %s5 = inlined_call_operand.vmem [shape: f32[1,1024], index: 5, kind: input, shape index: {}]
  %s6 = inlined_call_operand.vmem [shape: f32[2,8,1024], index: 6, kind: output, shape index: {}]
  %s7 = sld [smem:[#allocation0]]
  $region57: #{conv_block3d_pallas.1} parent=0
    _
  %s9 = ssub.s32 1, %s7
  %s10 = scalar_select 0, %s9, %s7
  loop: start=0, step=1, limit=4
  $region2: #{conv_block3d_pallas.1} parent=0 // loop_pre_header
    _
  $region3: #{conv_block3d_pallas.1} parent=0 // loop_header
    %s12 = sphi 0, %s16
    %p13 = scmp.ge.s32.totalorder %s12, 4
    %s22 = sphi 0, %s24
    %s25 = sphi 0, %s22
    %s26 = sphi 0, %s25
    %s42 = sphi 0, %s26
    %s46 = sphi 0, %s46
    %s48 = sphi 0, %s46
    %s49 = sphi 0, %s48
    %s63 = sphi 0, %s49
    %s67 = sphi 0, %s67
    %s69 = sphi 0, %s67
    %s70 = sphi 0, %s69
    %s84 = sphi 0, %s70
    %s88 = sphi 0, %s88
    %s90 = sphi 0, %s88
    %s91 = sphi 0, %s90
    %s105 = sphi 0, %s91
    %s109 = sphi 0, %s109
    %s111 = sphi 0, %s109
    %s112 = sphi 0, %s111
    %s126 = sphi 0, %s112
    %s130 = sphi 0, %s130
    %s132 = sphi 0, %s130
    %s133 = sphi 0, %s132
    %s147 = sphi 0, %s133
    %s153 = sphi 0, %s155
    %s156 = sphi 0, %s153
    %s157 = sphi 0, %s156
    %s173 = sphi 0, %s157
  $region4: #{conv_block3d_pallas.1} parent=0 // loop_header_branch
    %15 = sbr.rel (%p13) target = $region8
  $region5: #{conv_block3d_pallas.1} parent=0 // loop_body
    %s17 = ssub.s32 %s12, 1
    %s18 = ssub.s32 %s12, 2
    %s19 = sadd.s32 %s12, 1
    %s20 = ssub.s32 %s12, %s19
    %p21 = scmp.eq.s32.totalorder %s20, 0
    %s23 = sadd.s32 %s22, 1
    %s24 = scalar_select %p21, %s22, %s23
    %p27 = pneg %p21
    %p28 = scmp.eq.s32.totalorder %s12, 1
    %p29 = por %p27, %p28
    %p30 = scmp.ne.s32.totalorder %s22, %s25
    %p31 = scmp.eq.s32.totalorder %s12, 0
    %p32 = por %p30, %p31
    %p33 = scmp.ne.s32.totalorder %s22, %s25
    %p34 = scmp.eq.s32.totalorder %s17, 1
    %p35 = por %p33, %p34
    %p36 = scmp.ne.s32.totalorder %s25, %s26
    %p37 = scmp.eq.s32.totalorder %s17, 0
    %p38 = por %p36, %p37
    %p39 = scmp.ne.s32.totalorder %s25, %s26
    %p40 = scmp.eq.s32.totalorder %s18, 1
    %p41 = por %p39, %p40
    %p43 = scmp.ne.s32.totalorder %s26, %s42
    %p44 = scmp.eq.s32.totalorder %s18, 0
    %p45 = por %p43, %p44
    %s47 = sadd.s32 %s46, 1
    %p50 = scmp.eq.s32.totalorder %s12, 1
    %p51 = scmp.ne.s32.totalorder %s46, %s48
    %p52 = scmp.eq.s32.totalorder %s12, 0
    %p53 = por %p51, %p52
    %p54 = scmp.ne.s32.totalorder %s46, %s48
    %p55 = scmp.eq.s32.totalorder %s17, 1
    %p56 = por %p54, %p55
    %p57 = scmp.ne.s32.totalorder %s48, %s49
    %p58 = scmp.eq.s32.totalorder %s17, 0
    %p59 = por %p57, %p58
    %p60 = scmp.ne.s32.totalorder %s48, %s49
    %p61 = scmp.eq.s32.totalorder %s18, 1
    %p62 = por %p60, %p61
    %p64 = scmp.ne.s32.totalorder %s49, %s63
    %p65 = scmp.eq.s32.totalorder %s18, 0
    %p66 = por %p64, %p65
    %s68 = sadd.s32 %s67, 1
    %p71 = scmp.eq.s32.totalorder %s12, 1
    %p72 = scmp.ne.s32.totalorder %s67, %s69
    %p73 = scmp.eq.s32.totalorder %s12, 0
    %p74 = por %p72, %p73
    %p75 = scmp.ne.s32.totalorder %s67, %s69
    %p76 = scmp.eq.s32.totalorder %s17, 1
    %p77 = por %p75, %p76
    %p78 = scmp.ne.s32.totalorder %s69, %s70
    %p79 = scmp.eq.s32.totalorder %s17, 0
    %p80 = por %p78, %p79
    %p81 = scmp.ne.s32.totalorder %s69, %s70
    %p82 = scmp.eq.s32.totalorder %s18, 1
    %p83 = por %p81, %p82
    %p85 = scmp.ne.s32.totalorder %s70, %s84
    %p86 = scmp.eq.s32.totalorder %s18, 0
    %p87 = por %p85, %p86
    %s89 = sadd.s32 %s88, 1
    %p92 = scmp.eq.s32.totalorder %s12, 1
    %p93 = scmp.ne.s32.totalorder %s88, %s90
    %p94 = scmp.eq.s32.totalorder %s12, 0
    %p95 = por %p93, %p94
    %p96 = scmp.ne.s32.totalorder %s88, %s90
    %p97 = scmp.eq.s32.totalorder %s17, 1
    %p98 = por %p96, %p97
    %p99 = scmp.ne.s32.totalorder %s90, %s91
    %p100 = scmp.eq.s32.totalorder %s17, 0
    %p101 = por %p99, %p100
    %p102 = scmp.ne.s32.totalorder %s90, %s91
    %p103 = scmp.eq.s32.totalorder %s18, 1
    %p104 = por %p102, %p103
    %p106 = scmp.ne.s32.totalorder %s91, %s105
    %p107 = scmp.eq.s32.totalorder %s18, 0
    %p108 = por %p106, %p107
    %s110 = sadd.s32 %s109, 1
    %p113 = scmp.eq.s32.totalorder %s12, 1
    %p114 = scmp.ne.s32.totalorder %s109, %s111
    %p115 = scmp.eq.s32.totalorder %s12, 0
    %p116 = por %p114, %p115
    %p117 = scmp.ne.s32.totalorder %s109, %s111
    %p118 = scmp.eq.s32.totalorder %s17, 1
    %p119 = por %p117, %p118
    %p120 = scmp.ne.s32.totalorder %s111, %s112
    %p121 = scmp.eq.s32.totalorder %s17, 0
    %p122 = por %p120, %p121
    %p123 = scmp.ne.s32.totalorder %s111, %s112
    %p124 = scmp.eq.s32.totalorder %s18, 1
    %p125 = por %p123, %p124
    %p127 = scmp.ne.s32.totalorder %s112, %s126
    %p128 = scmp.eq.s32.totalorder %s18, 0
    %p129 = por %p127, %p128
    %s131 = sadd.s32 %s130, 1
    %p134 = scmp.eq.s32.totalorder %s12, 1
    %p135 = scmp.ne.s32.totalorder %s130, %s132
    %p136 = scmp.eq.s32.totalorder %s12, 0
    %p137 = por %p135, %p136
    %p138 = scmp.ne.s32.totalorder %s130, %s132
    %p139 = scmp.eq.s32.totalorder %s17, 1
    %p140 = por %p138, %p139
    %p141 = scmp.ne.s32.totalorder %s132, %s133
    %p142 = scmp.eq.s32.totalorder %s17, 0
    %p143 = por %p141, %p142
    %p144 = scmp.ne.s32.totalorder %s132, %s133
    %p145 = scmp.eq.s32.totalorder %s18, 1
    %p146 = por %p144, %p145
    %p148 = scmp.ne.s32.totalorder %s133, %s147
    %p149 = scmp.eq.s32.totalorder %s18, 0
    %p150 = por %p148, %p149
    %s151 = ssub.s32 %s12, %s19
    %p152 = scmp.eq.s32.totalorder %s151, 0
    %s154 = sadd.s32 %s153, 1
    %s155 = scalar_select %p152, %s153, %s154
    %p158 = pneg %p152
    %p159 = scmp.eq.s32.totalorder %s12, 1
    %p160 = por %p158, %p159
    %p161 = scmp.ne.s32.totalorder %s153, %s156
    %p162 = scmp.eq.s32.totalorder %s12, 0
    %p163 = por %p161, %p162
    %p164 = scmp.ne.s32.totalorder %s153, %s156
    %p165 = scmp.eq.s32.totalorder %s17, 1
    %p166 = por %p164, %p165
    %p167 = scmp.ne.s32.totalorder %s156, %s157
    %p168 = scmp.eq.s32.totalorder %s17, 0
    %p169 = por %p167, %p168
    %p170 = scmp.ne.s32.totalorder %s156, %s157
    %p171 = scmp.eq.s32.totalorder %s18, 1
    %p172 = por %p170, %p171
    %p174 = scmp.ne.s32.totalorder %s157, %s173
    %p175 = scmp.eq.s32.totalorder %s18, 0
    %p176 = por %p174, %p175
    %p177 = scmp.le.s32.totalorder 1, %s12
    %p178 = scmp.lt.s32.totalorder %s12, 3
    %p179 = pnand %p177, %p178
    %p180 = pneg %p179
    // Predicated region
    $region9: #{conv_block3d_pallas.1} parent=5 // pred_check
      _
    $region10: #{conv_block3d_pallas.1} parent=5 // pred_check_branch
      %182 = sbr.rel (%p179) target = $region12
    $region11: #{conv_block3d_pallas.1} parent=5 // pred_region
      %s183 = ssub.s32 %s12, 1
      // Predicated region
      $region13: #{conv_block3d_pallas.1} parent=11 // pred_check
        %p184 = pneg %p59
      $region14: #{conv_block3d_pallas.1} parent=11 // pred_check_branch
        %186 = sbr.rel (%p184) target = $region16
      $region15: #{conv_block3d_pallas.1} parent=11 // pred_region
        _
      $region16: #{conv_block3d_pallas.1} parent=11 // pred_fallthru
        _
      // Predicated region
      $region17: #{conv_block3d_pallas.1} parent=11 // pred_check
        %p187 = pneg %p80
      $region18: #{conv_block3d_pallas.1} parent=11 // pred_check_branch
        %189 = sbr.rel (%p187) target = $region20
      $region19: #{conv_block3d_pallas.1} parent=11 // pred_region
        _
      $region20: #{conv_block3d_pallas.1} parent=11 // pred_fallthru
        _
      // Predicated region
      $region21: #{conv_block3d_pallas.1} parent=11 // pred_check
        %p190 = pneg %p101
      $region22: #{conv_block3d_pallas.1} parent=11 // pred_check_branch
        %192 = sbr.rel (%p190) target = $region24
      $region23: #{conv_block3d_pallas.1} parent=11 // pred_region
        _
      $region24: #{conv_block3d_pallas.1} parent=11 // pred_fallthru
        _
      // Predicated region
      $region25: #{conv_block3d_pallas.1} parent=11 // pred_check
        %p193 = pneg %p122
      $region26: #{conv_block3d_pallas.1} parent=11 // pred_check_branch
        %195 = sbr.rel (%p193) target = $region28
      $region27: #{conv_block3d_pallas.1} parent=11 // pred_region
        _
      $region28: #{conv_block3d_pallas.1} parent=11 // pred_fallthru
        _
      // Predicated region
      $region29: #{conv_block3d_pallas.1} parent=11 // pred_check
        %p196 = pneg %p143
      $region30: #{conv_block3d_pallas.1} parent=11 // pred_check_branch
        %198 = sbr.rel (%p196) target = $region32
      $region31: #{conv_block3d_pallas.1} parent=11 // pred_region
        _
      $region32: #{conv_block3d_pallas.1} parent=11 // pred_fallthru
        _
    $region12: #{conv_block3d_pallas.1} parent=5 // pred_fallthru
      _
    %p199 = scmp.lt.s32.totalorder %s12, 2
    // Predicated region
    $region33: #{conv_block3d_pallas.1} parent=5 // pred_check
      %p200 = pneg %p199
    $region34: #{conv_block3d_pallas.1} parent=5 // pred_check_branch
      %202 = sbr.rel (%p200) target = $region36
    $region35: #{conv_block3d_pallas.1} parent=5 // pred_region
      // Predicated region
      $region37: #{conv_block3d_pallas.1} parent=35 // pred_check
        %p203 = pneg %p32
      $region38: #{conv_block3d_pallas.1} parent=35 // pred_check_branch
        %205 = sbr.rel (%p203) target = $region40
      $region39: #{conv_block3d_pallas.1} parent=35 // pred_region
        %p206 = scmp.lt.s32.totalorder %s12, 1
        %s207 = scalar_select %p206, %s12, 1
        %s208 = smul.addr %s207, 8
        %s209 = smul.addr %s208, 4
        %s210 = scalar_lea.vmem %s0, %s209
      $region40: #{conv_block3d_pallas.1} parent=35 // pred_fallthru
        _
    $region36: #{conv_block3d_pallas.1} parent=5 // pred_fallthru
      _
    %p211 = scmp.le.s32.totalorder 1, %s12
    %p212 = scmp.lt.s32.totalorder %s12, 3
    %p213 = pnand %p211, %p212
    %p214 = pneg %p213
    // Predicated region
    $region41: #{conv_block3d_pallas.1} parent=5 // pred_check
      _
    $region42: #{conv_block3d_pallas.1} parent=5 // pred_check_branch
      %216 = sbr.rel (%p213) target = $region44
    $region43: #{conv_block3d_pallas.1} parent=5 // pred_region
      %s217 = ssub.s32 %s12, 1
      %p218 = scmp.lt.s32.totalorder %s17, 1
      %s219 = scalar_select %p218, %s17, 1
      %s220 = smul.addr %s219, 8
      %s221 = smul.addr %s220, 4
      %s222 = scalar_lea.vmem %s0, %s221
      %p223 = pneg %p38
      %p224 = pneg %p35
      %p225 = pneg %p59
      %p226 = pneg %p56
      %p227 = pneg %p80
      %p228 = pneg %p77
      %p229 = pneg %p101
      %p230 = pneg %p98
      %p231 = pneg %p122
      %p232 = pneg %p119
      %p233 = pneg %p143
      %p234 = pneg %p140
      %p235 = pneg %p169
      %p236 = pneg %p166
      %p237 = scmp.lt.s32.totalorder %s17, 1
      %s238 = scalar_select %p237, %s17, 1
      %s239 = smul.addr %s238, 8
      %s240 = smul.addr %s239, 8
      %s241 = scalar_lea.vmem %s6, %s240
      %p242 = scmp.lt.s32.totalorder %s17, 1
      %s243 = scalar_select %p242, %s17, 1
      %s244 = smul.addr %s243, 8
      %s245 = smul.addr %s244, 4
      %s246 = scalar_lea.vmem %s0, %s245
      %p247 = scmp.lt.s32.totalorder %s17, 1
      %s248 = scalar_select %p247, %s17, 1
      %s249 = smul.addr %s248, 8
      %s250 = smul.addr %s249, 8
      %s251 = scalar_lea.vmem %s6, %s250
      %252 = vst [vmem:[#allocation2 + $0x340] sm:$0xf0] 0.0
      %253 = vst [vmem:[#allocation2 + $0x348] sm:$0xf0] 0.0
      %254 = vst [vmem:[#allocation2 + $0x350] sm:$0xf0] 0.0
      %255 = vst [vmem:[#allocation2 + $0x358] sm:$0xf0] 0.0
      %256 = vst [vmem:[#allocation2 + $0x360] sm:$0xf0] 0.0
      %257 = vst [vmem:[#allocation2 + $0x368] sm:$0xf0] 0.0
      %258 = vst [vmem:[#allocation2 + $0x370] sm:$0xf0] 0.0
      %259 = vst [vmem:[#allocation2 + $0x378] sm:$0xf0] 0.0
      %260 = vst [vmem:[#allocation2 + $0x380] sm:$0xff] 0.0
      %261 = vst [vmem:[#allocation2 + $0x388] sm:$0xff] 0.0
      %262 = vst [vmem:[#allocation2 + $0x390] sm:$0xff] 0.0
      %263 = vst [vmem:[#allocation2 + $0x398] sm:$0xff] 0.0
      %264 = vst [vmem:[#allocation2 + $0x3a0] sm:$0xff] 0.0
      %265 = vst [vmem:[#allocation2 + $0x3a8] sm:$0xff] 0.0
      %266 = vst [vmem:[#allocation2 + $0x3b0] sm:$0xff] 0.0
      %267 = vst [vmem:[#allocation2 + $0x3b8] sm:$0xff] 0.0
      %268 = vst [vmem:[#allocation2 + $0x3c0] sm:$0xff] 0.0
      %269 = vst [vmem:[#allocation2 + $0x3c8] sm:$0xff] 0.0
      %270 = vst [vmem:[#allocation2 + $0x3d0] sm:$0xff] 0.0
      %271 = vst [vmem:[#allocation2 + $0x3d8] sm:$0xff] 0.0
      %272 = vst [vmem:[#allocation2 + $0x3e0] sm:$0xff] 0.0
      %273 = vst [vmem:[#allocation2 + $0x3e8] sm:$0xff] 0.0
      %274 = vst [vmem:[#allocation2 + $0x3f0] sm:$0xff] 0.0
      %275 = vst [vmem:[#allocation2 + $0x3f8] sm:$0xff] 0.0
      %v276 = vld [vmem:[%s246] sm:$0xff]
      %v277 = vld [vmem:[%s246 + $0x8] sm:$0xff]
      %v278 = vld [vmem:[%s246 + $0x10] sm:$0xff]
      %v279 = vld [vmem:[%s246 + $0x18] sm:$0xff]
      %v284 = vcombine.high %v276, %v276
      %v285 = vcombine.high %v277, %v277
      %v286 = vcombine.high %v278, %v278
      %v287 = vcombine.high %v279, %v279
      %292 = vst [vmem:[#allocation2] sm:$0xf] %v276
      %293 = vst [vmem:[#allocation2 + $0x8] sm:$0xf] %v284
      %294 = vst [vmem:[#allocation2 + $0x10] sm:$0xf] %v277
      %295 = vst [vmem:[#allocation2 + $0x18] sm:$0xf] %v285
      %296 = vst [vmem:[#allocation2 + $0x20] sm:$0xf] %v278
      %297 = vst [vmem:[#allocation2 + $0x28] sm:$0xf] %v286
      %298 = vst [vmem:[#allocation2 + $0x30] sm:$0xf] %v279
      %299 = vst [vmem:[#allocation2 + $0x38] sm:$0xf] %v287
      %300 = vrot.lane.b32.xlu0 %v276, 127
      %v301 = vpop.permute.xlu0 %300
      %302 = vrot.lane.b32.xlu0 %v284, 127
      %v303 = vpop.permute.xlu0 %302
      %304 = vrot.lane.b32.xlu0 %v277, 127
      %v305 = vpop.permute.xlu0 %304
      %306 = vrot.lane.b32.xlu0 %v285, 127
      %v307 = vpop.permute.xlu0 %306
      %308 = vrot.lane.b32.xlu0 %v278, 127
      %v309 = vpop.permute.xlu0 %308
      %310 = vrot.lane.b32.xlu0 %v286, 127
      %v311 = vpop.permute.xlu0 %310
      %312 = vrot.lane.b32.xlu0 %v279, 127
      %v313 = vpop.permute.xlu0 %312
      %314 = vrot.lane.b32.xlu0 %v287, 127
      %v315 = vpop.permute.xlu0 %314
      %v316 = vlaneseq
      %v317 = vand.u32 %v316, 127
      %vm318 = vcmp.lt.s32.totalorder %v317, 127
      %v319 = vsel %vm318, %v313, %v315
      %v320 = vsel %vm318, %v311, %v313
      %v321 = vsel %vm318, %v309, %v311
      %v322 = vsel %vm318, %v307, %v309
      %v323 = vsel %vm318, %v305, %v307
      %v324 = vsel %vm318, %v303, %v305
      %v325 = vsel %vm318, %v301, %v303
      %v326 = vsel %vm318, %v315, %v301
      %v335 = vrot.slane %v325, 4
      %v336 = vrot.slane %v324, 4
      %v337 = vrot.slane %v323, 4
      %v338 = vrot.slane %v322, 4
      %v339 = vrot.slane %v321, 4
      %v340 = vrot.slane %v320, 4
      %v341 = vrot.slane %v319, 4
      %v342 = vrot.slane %v326, 4
      %351 = vst [vmem:[#allocation2] sm:$0xf0] %v335
      %352 = vst [vmem:[#allocation2 + $0x8] sm:$0xf0] %v336
      %353 = vst [vmem:[#allocation2 + $0x10] sm:$0xf0] %v337
      %354 = vst [vmem:[#allocation2 + $0x18] sm:$0xf0] %v338
      %355 = vst [vmem:[#allocation2 + $0x20] sm:$0xf0] %v339
      %356 = vst [vmem:[#allocation2 + $0x28] sm:$0xf0] %v340
      %357 = vst [vmem:[#allocation2 + $0x30] sm:$0xf0] %v341
      %358 = vst [vmem:[#allocation2 + $0x38] sm:$0xf0] %v342
      %359 = vrot.lane.b32.xlu0 %v276, 126
      %v360 = vpop.permute.xlu0 %359
      %361 = vrot.lane.b32.xlu0 %v284, 126
      %v362 = vpop.permute.xlu0 %361
      %363 = vrot.lane.b32.xlu0 %v277, 126
      %v364 = vpop.permute.xlu0 %363
      %365 = vrot.lane.b32.xlu0 %v285, 126
      %v366 = vpop.permute.xlu0 %365
      %367 = vrot.lane.b32.xlu0 %v278, 126
      %v368 = vpop.permute.xlu0 %367
      %369 = vrot.lane.b32.xlu0 %v286, 126
      %v370 = vpop.permute.xlu0 %369
      %371 = vrot.lane.b32.xlu0 %v279, 126
      %v372 = vpop.permute.xlu0 %371
      %373 = vrot.lane.b32.xlu0 %v287, 126
      %v374 = vpop.permute.xlu0 %373
      %vm375 = vcmp.lt.s32.totalorder %v317, 126
      %v376 = vsel %vm375, %v372, %v374
      %v377 = vsel %vm375, %v370, %v372
      %v378 = vsel %vm375, %v368, %v370
      %v379 = vsel %vm375, %v366, %v368
      %v380 = vsel %vm375, %v364, %v366
      %v381 = vsel %vm375, %v362, %v364
      %v382 = vsel %vm375, %v360, %v362
      %v383 = vsel %vm375, %v374, %v360
      %384 = vst [vmem:[#allocation2 + $0x40] sm:$0xf] %v382
      %385 = vst [vmem:[#allocation2 + $0x48] sm:$0xf] %v381
      %386 = vst [vmem:[#allocation2 + $0x50] sm:$0xf] %v380
      %387 = vst [vmem:[#allocation2 + $0x58] sm:$0xf] %v379
      %388 = vst [vmem:[#allocation2 + $0x60] sm:$0xf] %v378
      %389 = vst [vmem:[#allocation2 + $0x68] sm:$0xf] %v377
      %390 = vst [vmem:[#allocation2 + $0x70] sm:$0xf] %v376
      %391 = vst [vmem:[#allocation2 + $0x78] sm:$0xf] %v383
      %392 = vrot.lane.b32.xlu0 %v276, 118
      %v393 = vpop.permute.xlu0 %392
      %394 = vrot.lane.b32.xlu0 %v284, 118
      %v395 = vpop.permute.xlu0 %394
      %396 = vrot.lane.b32.xlu0 %v277, 118
      %v397 = vpop.permute.xlu0 %396
      %398 = vrot.lane.b32.xlu0 %v285, 118
      %v399 = vpop.permute.xlu0 %398
      %400 = vrot.lane.b32.xlu0 %v278, 118
      %v401 = vpop.permute.xlu0 %400
      %402 = vrot.lane.b32.xlu0 %v286, 118
      %v403 = vpop.permute.xlu0 %402
      %404 = vrot.lane.b32.xlu0 %v279, 118
      %v405 = vpop.permute.xlu0 %404
      %406 = vrot.lane.b32.xlu0 %v287, 118
      %v407 = vpop.permute.xlu0 %406
      %vm408 = vcmp.lt.s32.totalorder %v317, 118
      %v409 = vsel %vm408, %v405, %v407
      %v410 = vsel %vm408, %v403, %v405
      %v411 = vsel %vm408, %v401, %v403
      %v412 = vsel %vm408, %v399, %v401
      %v413 = vsel %vm408, %v397, %v399
      %v414 = vsel %vm408, %v395, %v397
      %v415 = vsel %vm408, %v393, %v395
      %v416 = vsel %vm408, %v407, %v393
      %v425 = vrot.slane %v415, 4
      %v426 = vrot.slane %v414, 4
      %v427 = vrot.slane %v413, 4
      %v428 = vrot.slane %v412, 4
      %v429 = vrot.slane %v411, 4
      %v430 = vrot.slane %v410, 4
      %v431 = vrot.slane %v409, 4
      %v432 = vrot.slane %v416, 4
      %441 = vst [vmem:[#allocation2 + $0x40] sm:$0xf0] %v425
      %442 = vst [vmem:[#allocation2 + $0x48] sm:$0xf0] %v426
      %443 = vst [vmem:[#allocation2 + $0x50] sm:$0xf0] %v427
      %444 = vst [vmem:[#allocation2 + $0x58] sm:$0xf0] %v428
      %445 = vst [vmem:[#allocation2 + $0x60] sm:$0xf0] %v429
      %446 = vst [vmem:[#allocation2 + $0x68] sm:$0xf0] %v430
      %447 = vst [vmem:[#allocation2 + $0x70] sm:$0xf0] %v431
      %448 = vst [vmem:[#allocation2 + $0x78] sm:$0xf0] %v432
      %449 = vrot.lane.b32.xlu0 %v276, 117
      %v450 = vpop.permute.xlu0 %449
      %451 = vrot.lane.b32.xlu0 %v284, 117
      %v452 = vpop.permute.xlu0 %451
      %453 = vrot.lane.b32.xlu0 %v277, 117
      %v454 = vpop.permute.xlu0 %453
      %455 = vrot.lane.b32.xlu0 %v285, 117
      %v456 = vpop.permute.xlu0 %455
      %457 = vrot.lane.b32.xlu0 %v278, 117
      %v458 = vpop.permute.xlu0 %457
      %459 = vrot.lane.b32.xlu0 %v286, 117
      %v460 = vpop.permute.xlu0 %459
      %461 = vrot.lane.b32.xlu0 %v279, 117
      %v462 = vpop.permute.xlu0 %461
      %463 = vrot.lane.b32.xlu0 %v287, 117
      %v464 = vpop.permute.xlu0 %463
      %vm465 = vcmp.lt.s32.totalorder %v317, 117
      %v466 = vsel %vm465, %v462, %v464
      %v467 = vsel %vm465, %v460, %v462
      %v468 = vsel %vm465, %v458, %v460
      %v469 = vsel %vm465, %v456, %v458
      %v470 = vsel %vm465, %v454, %v456
      %v471 = vsel %vm465, %v452, %v454
      %v472 = vsel %vm465, %v450, %v452
      %v473 = vsel %vm465, %v464, %v450
      %474 = vst [vmem:[#allocation2 + $0x80] sm:$0xf] %v472
      %475 = vst [vmem:[#allocation2 + $0x88] sm:$0xf] %v471
      %476 = vst [vmem:[#allocation2 + $0x90] sm:$0xf] %v470
      %477 = vst [vmem:[#allocation2 + $0x98] sm:$0xf] %v469
      %478 = vst [vmem:[#allocation2 + $0xa0] sm:$0xf] %v468
      %479 = vst [vmem:[#allocation2 + $0xa8] sm:$0xf] %v467
      %480 = vst [vmem:[#allocation2 + $0xb0] sm:$0xf] %v466
      %481 = vst [vmem:[#allocation2 + $0xb8] sm:$0xf] %v473
      %482 = vrot.lane.b32.xlu0 %v276, 116
      %v483 = vpop.permute.xlu0 %482
      %484 = vrot.lane.b32.xlu0 %v284, 116
      %v485 = vpop.permute.xlu0 %484
      %486 = vrot.lane.b32.xlu0 %v277, 116
      %v487 = vpop.permute.xlu0 %486
      %488 = vrot.lane.b32.xlu0 %v285, 116
      %v489 = vpop.permute.xlu0 %488
      %490 = vrot.lane.b32.xlu0 %v278, 116
      %v491 = vpop.permute.xlu0 %490
      %492 = vrot.lane.b32.xlu0 %v286, 116
      %v493 = vpop.permute.xlu0 %492
      %494 = vrot.lane.b32.xlu0 %v279, 116
      %v495 = vpop.permute.xlu0 %494
      %496 = vrot.lane.b32.xlu0 %v287, 116
      %v497 = vpop.permute.xlu0 %496
      %vm498 = vcmp.lt.s32.totalorder %v317, 116
      %v499 = vsel %vm498, %v495, %v497
      %v500 = vsel %vm498, %v493, %v495
      %v501 = vsel %vm498, %v491, %v493
      %v502 = vsel %vm498, %v489, %v491
      %v503 = vsel %vm498, %v487, %v489
      %v504 = vsel %vm498, %v485, %v487
      %v505 = vsel %vm498, %v483, %v485
      %v506 = vsel %vm498, %v497, %v483
      %v515 = vrot.slane %v505, 4
      %v516 = vrot.slane %v504, 4
      %v517 = vrot.slane %v503, 4
      %v518 = vrot.slane %v502, 4
      %v519 = vrot.slane %v501, 4
      %v520 = vrot.slane %v500, 4
      %v521 = vrot.slane %v499, 4
      %v522 = vrot.slane %v506, 4
      %531 = vst [vmem:[#allocation2 + $0x80] sm:$0xf0] %v515
      %532 = vst [vmem:[#allocation2 + $0x88] sm:$0xf0] %v516
      %533 = vst [vmem:[#allocation2 + $0x90] sm:$0xf0] %v517
      %534 = vst [vmem:[#allocation2 + $0x98] sm:$0xf0] %v518
      %535 = vst [vmem:[#allocation2 + $0xa0] sm:$0xf0] %v519
      %536 = vst [vmem:[#allocation2 + $0xa8] sm:$0xf0] %v520
      %537 = vst [vmem:[#allocation2 + $0xb0] sm:$0xf0] %v521
      %538 = vst [vmem:[#allocation2 + $0xb8] sm:$0xf0] %v522
      %539 = vrot.lane.b32.xlu0 %v276, 108
      %v540 = vpop.permute.xlu0 %539
      %541 = vrot.lane.b32.xlu0 %v284, 108
      %v542 = vpop.permute.xlu0 %541
      %543 = vrot.lane.b32.xlu0 %v277, 108
      %v544 = vpop.permute.xlu0 %543
      %545 = vrot.lane.b32.xlu0 %v285, 108
      %v546 = vpop.permute.xlu0 %545
      %547 = vrot.lane.b32.xlu0 %v278, 108
      %v548 = vpop.permute.xlu0 %547
      %549 = vrot.lane.b32.xlu0 %v286, 108
      %v550 = vpop.permute.xlu0 %549
      %551 = vrot.lane.b32.xlu0 %v279, 108
      %v552 = vpop.permute.xlu0 %551
      %553 = vrot.lane.b32.xlu0 %v287, 108
      %v554 = vpop.permute.xlu0 %553
      %vm555 = vcmp.lt.s32.totalorder %v317, 108
      %v556 = vsel %vm555, %v552, %v554
      %v557 = vsel %vm555, %v550, %v552
      %v558 = vsel %vm555, %v548, %v550
      %v559 = vsel %vm555, %v546, %v548
      %v560 = vsel %vm555, %v544, %v546
      %v561 = vsel %vm555, %v542, %v544
      %v562 = vsel %vm555, %v540, %v542
      %v563 = vsel %vm555, %v554, %v540
      %564 = vst [vmem:[#allocation2 + $0xc0] sm:$0xf] %v562
      %565 = vst [vmem:[#allocation2 + $0xc8] sm:$0xf] %v561
      %566 = vst [vmem:[#allocation2 + $0xd0] sm:$0xf] %v560
      %567 = vst [vmem:[#allocation2 + $0xd8] sm:$0xf] %v559
      %568 = vst [vmem:[#allocation2 + $0xe0] sm:$0xf] %v558
      %569 = vst [vmem:[#allocation2 + $0xe8] sm:$0xf] %v557
      %570 = vst [vmem:[#allocation2 + $0xf0] sm:$0xf] %v556
      %571 = vst [vmem:[#allocation2 + $0xf8] sm:$0xf] %v563
      %572 = vrot.lane.b32.xlu0 %v276, 107
      %v573 = vpop.permute.xlu0 %572
      %574 = vrot.lane.b32.xlu0 %v284, 107
      %v575 = vpop.permute.xlu0 %574
      %576 = vrot.lane.b32.xlu0 %v277, 107
      %v577 = vpop.permute.xlu0 %576
      %578 = vrot.lane.b32.xlu0 %v285, 107
      %v579 = vpop.permute.xlu0 %578
      %580 = vrot.lane.b32.xlu0 %v278, 107
      %v581 = vpop.permute.xlu0 %580
      %582 = vrot.lane.b32.xlu0 %v286, 107
      %v583 = vpop.permute.xlu0 %582
      %584 = vrot.lane.b32.xlu0 %v279, 107
      %v585 = vpop.permute.xlu0 %584
      %586 = vrot.lane.b32.xlu0 %v287, 107
      %v587 = vpop.permute.xlu0 %586
      %vm588 = vcmp.lt.s32.totalorder %v317, 107
      %v589 = vsel %vm588, %v585, %v587
      %v590 = vsel %vm588, %v583, %v585
      %v591 = vsel %vm588, %v581, %v583
      %v592 = vsel %vm588, %v579, %v581
      %v593 = vsel %vm588, %v577, %v579
      %v594 = vsel %vm588, %v575, %v577
      %v595 = vsel %vm588, %v573, %v575
      %v596 = vsel %vm588, %v587, %v573
      %v605 = vrot.slane %v595, 4
      %v606 = vrot.slane %v594, 4
      %v607 = vrot.slane %v593, 4
      %v608 = vrot.slane %v592, 4
      %v609 = vrot.slane %v591, 4
      %v610 = vrot.slane %v590, 4
      %v611 = vrot.slane %v589, 4
      %v612 = vrot.slane %v596, 4
      %621 = vst [vmem:[#allocation2 + $0xc0] sm:$0xf0] %v605
      %622 = vst [vmem:[#allocation2 + $0xc8] sm:$0xf0] %v606
      %623 = vst [vmem:[#allocation2 + $0xd0] sm:$0xf0] %v607
      %624 = vst [vmem:[#allocation2 + $0xd8] sm:$0xf0] %v608
      %625 = vst [vmem:[#allocation2 + $0xe0] sm:$0xf0] %v609
      %626 = vst [vmem:[#allocation2 + $0xe8] sm:$0xf0] %v610
      %627 = vst [vmem:[#allocation2 + $0xf0] sm:$0xf0] %v611
      %628 = vst [vmem:[#allocation2 + $0xf8] sm:$0xf0] %v612
      %629 = vrot.lane.b32.xlu0 %v276, 106
      %v630 = vpop.permute.xlu0 %629
      %631 = vrot.lane.b32.xlu0 %v284, 106
      %v632 = vpop.permute.xlu0 %631
      %633 = vrot.lane.b32.xlu0 %v277, 106
      %v634 = vpop.permute.xlu0 %633
      %635 = vrot.lane.b32.xlu0 %v285, 106
      %v636 = vpop.permute.xlu0 %635
      %637 = vrot.lane.b32.xlu0 %v278, 106
      %v638 = vpop.permute.xlu0 %637
      %639 = vrot.lane.b32.xlu0 %v286, 106
      %v640 = vpop.permute.xlu0 %639
      %641 = vrot.lane.b32.xlu0 %v279, 106
      %v642 = vpop.permute.xlu0 %641
      %643 = vrot.lane.b32.xlu0 %v287, 106
      %v644 = vpop.permute.xlu0 %643
      %vm645 = vcmp.lt.s32.totalorder %v317, 106
      %v646 = vsel %vm645, %v642, %v644
      %v647 = vsel %vm645, %v640, %v642
      %v648 = vsel %vm645, %v638, %v640
      %v649 = vsel %vm645, %v636, %v638
      %v650 = vsel %vm645, %v634, %v636
      %v651 = vsel %vm645, %v632, %v634
      %v652 = vsel %vm645, %v630, %v632
      %v653 = vsel %vm645, %v644, %v630
      %654 = vst [vmem:[#allocation2 + $0x100] sm:$0xf] %v652
      %655 = vst [vmem:[#allocation2 + $0x108] sm:$0xf] %v651
      %656 = vst [vmem:[#allocation2 + $0x110] sm:$0xf] %v650
      %657 = vst [vmem:[#allocation2 + $0x118] sm:$0xf] %v649
      %658 = vst [vmem:[#allocation2 + $0x120] sm:$0xf] %v648
      %659 = vst [vmem:[#allocation2 + $0x128] sm:$0xf] %v647
      %660 = vst [vmem:[#allocation2 + $0x130] sm:$0xf] %v646
      %661 = vst [vmem:[#allocation2 + $0x138] sm:$0xf] %v653
      %662 = vrot.lane.b32.xlu0 %v276, 28
      %v663 = vpop.permute.xlu0 %662
      %664 = vrot.lane.b32.xlu0 %v284, 28
      %v665 = vpop.permute.xlu0 %664
      %666 = vrot.lane.b32.xlu0 %v277, 28
      %v667 = vpop.permute.xlu0 %666
      %668 = vrot.lane.b32.xlu0 %v285, 28
      %v669 = vpop.permute.xlu0 %668
      %670 = vrot.lane.b32.xlu0 %v278, 28
      %v671 = vpop.permute.xlu0 %670
      %672 = vrot.lane.b32.xlu0 %v286, 28
      %v673 = vpop.permute.xlu0 %672
      %674 = vrot.lane.b32.xlu0 %v279, 28
      %v675 = vpop.permute.xlu0 %674
      %676 = vrot.lane.b32.xlu0 %v287, 28
      %v677 = vpop.permute.xlu0 %676
      %vm678 = vcmp.lt.s32.totalorder %v317, 28
      %v679 = vsel %vm678, %v675, %v677
      %v680 = vsel %vm678, %v673, %v675
      %v681 = vsel %vm678, %v671, %v673
      %v682 = vsel %vm678, %v669, %v671
      %v683 = vsel %vm678, %v667, %v669
      %v684 = vsel %vm678, %v665, %v667
      %v685 = vsel %vm678, %v663, %v665
      %v686 = vsel %vm678, %v677, %v663
      %v695 = vrot.slane %v685, 4
      %v696 = vrot.slane %v684, 4
      %v697 = vrot.slane %v683, 4
      %v698 = vrot.slane %v682, 4
      %v699 = vrot.slane %v681, 4
      %v700 = vrot.slane %v680, 4
      %v701 = vrot.slane %v679, 4
      %v702 = vrot.slane %v686, 4
      %711 = vst [vmem:[#allocation2 + $0x100] sm:$0xf0] %v695
      %712 = vst [vmem:[#allocation2 + $0x108] sm:$0xf0] %v696
      %713 = vst [vmem:[#allocation2 + $0x110] sm:$0xf0] %v697
      %714 = vst [vmem:[#allocation2 + $0x118] sm:$0xf0] %v698
      %715 = vst [vmem:[#allocation2 + $0x120] sm:$0xf0] %v699
      %716 = vst [vmem:[#allocation2 + $0x128] sm:$0xf0] %v700
      %717 = vst [vmem:[#allocation2 + $0x130] sm:$0xf0] %v701
      %718 = vst [vmem:[#allocation2 + $0x138] sm:$0xf0] %v702
      %719 = vrot.lane.b32.xlu0 %v276, 27
      %v720 = vpop.permute.xlu0 %719
      %721 = vrot.lane.b32.xlu0 %v284, 27
      %v722 = vpop.permute.xlu0 %721
      %723 = vrot.lane.b32.xlu0 %v277, 27
      %v724 = vpop.permute.xlu0 %723
      %725 = vrot.lane.b32.xlu0 %v285, 27
      %v726 = vpop.permute.xlu0 %725
      %727 = vrot.lane.b32.xlu0 %v278, 27
      %v728 = vpop.permute.xlu0 %727
      %729 = vrot.lane.b32.xlu0 %v286, 27
      %v730 = vpop.permute.xlu0 %729
      %731 = vrot.lane.b32.xlu0 %v279, 27
      %v732 = vpop.permute.xlu0 %731
      %733 = vrot.lane.b32.xlu0 %v287, 27
      %v734 = vpop.permute.xlu0 %733
      %vm735 = vcmp.lt.s32.totalorder %v317, 27
      %v736 = vsel %vm735, %v732, %v734
      %v737 = vsel %vm735, %v730, %v732
      %v738 = vsel %vm735, %v728, %v730
      %v739 = vsel %vm735, %v726, %v728
      %v740 = vsel %vm735, %v724, %v726
      %v741 = vsel %vm735, %v722, %v724
      %v742 = vsel %vm735, %v720, %v722
      %v743 = vsel %vm735, %v734, %v720
      %744 = vst [vmem:[#allocation2 + $0x140] sm:$0xf] %v742
      %745 = vst [vmem:[#allocation2 + $0x148] sm:$0xf] %v741
      %746 = vst [vmem:[#allocation2 + $0x150] sm:$0xf] %v740
      %747 = vst [vmem:[#allocation2 + $0x158] sm:$0xf] %v739
      %748 = vst [vmem:[#allocation2 + $0x160] sm:$0xf] %v738
      %749 = vst [vmem:[#allocation2 + $0x168] sm:$0xf] %v737
      %750 = vst [vmem:[#allocation2 + $0x170] sm:$0xf] %v736
      %751 = vst [vmem:[#allocation2 + $0x178] sm:$0xf] %v743
      %752 = vrot.lane.b32.xlu0 %v276, 26
      %v753 = vpop.permute.xlu0 %752
      %754 = vrot.lane.b32.xlu0 %v284, 26
      %v755 = vpop.permute.xlu0 %754
      %756 = vrot.lane.b32.xlu0 %v277, 26
      %v757 = vpop.permute.xlu0 %756
      %758 = vrot.lane.b32.xlu0 %v285, 26
      %v759 = vpop.permute.xlu0 %758
      %760 = vrot.lane.b32.xlu0 %v278, 26
      %v761 = vpop.permute.xlu0 %760
      %762 = vrot.lane.b32.xlu0 %v286, 26
      %v763 = vpop.permute.xlu0 %762
      %764 = vrot.lane.b32.xlu0 %v279, 26
      %v765 = vpop.permute.xlu0 %764
      %766 = vrot.lane.b32.xlu0 %v287, 26
      %v767 = vpop.permute.xlu0 %766
      %vm768 = vcmp.lt.s32.totalorder %v317, 26
      %v769 = vsel %vm768, %v765, %v767
      %v770 = vsel %vm768, %v763, %v765
      %v771 = vsel %vm768, %v761, %v763
      %v772 = vsel %vm768, %v759, %v761
      %v773 = vsel %vm768, %v757, %v759
      %v774 = vsel %vm768, %v755, %v757
      %v775 = vsel %vm768, %v753, %v755
      %v776 = vsel %vm768, %v767, %v753
      %v785 = vrot.slane %v775, 4
      %v786 = vrot.slane %v774, 4
      %v787 = vrot.slane %v773, 4
      %v788 = vrot.slane %v772, 4
      %v789 = vrot.slane %v771, 4
      %v790 = vrot.slane %v770, 4
      %v791 = vrot.slane %v769, 4
      %v792 = vrot.slane %v776, 4
      %801 = vst [vmem:[#allocation2 + $0x140] sm:$0xf0] %v785
      %802 = vst [vmem:[#allocation2 + $0x148] sm:$0xf0] %v786
      %803 = vst [vmem:[#allocation2 + $0x150] sm:$0xf0] %v787
      %804 = vst [vmem:[#allocation2 + $0x158] sm:$0xf0] %v788
      %805 = vst [vmem:[#allocation2 + $0x160] sm:$0xf0] %v789
      %806 = vst [vmem:[#allocation2 + $0x168] sm:$0xf0] %v790
      %807 = vst [vmem:[#allocation2 + $0x170] sm:$0xf0] %v791
      %808 = vst [vmem:[#allocation2 + $0x178] sm:$0xf0] %v792
      %809 = vrot.lane.b32.xlu0 %v276, 18
      %v810 = vpop.permute.xlu0 %809
      %811 = vrot.lane.b32.xlu0 %v284, 18
      %v812 = vpop.permute.xlu0 %811
      %813 = vrot.lane.b32.xlu0 %v277, 18
      %v814 = vpop.permute.xlu0 %813
      %815 = vrot.lane.b32.xlu0 %v285, 18
      %v816 = vpop.permute.xlu0 %815
      %817 = vrot.lane.b32.xlu0 %v278, 18
      %v818 = vpop.permute.xlu0 %817
      %819 = vrot.lane.b32.xlu0 %v286, 18
      %v820 = vpop.permute.xlu0 %819
      %821 = vrot.lane.b32.xlu0 %v279, 18
      %v822 = vpop.permute.xlu0 %821
      %823 = vrot.lane.b32.xlu0 %v287, 18
      %v824 = vpop.permute.xlu0 %823
      %vm825 = vcmp.lt.s32.totalorder %v317, 18
      %v826 = vsel %vm825, %v822, %v824
      %v827 = vsel %vm825, %v820, %v822
      %v828 = vsel %vm825, %v818, %v820
      %v829 = vsel %vm825, %v816, %v818
      %v830 = vsel %vm825, %v814, %v816
      %v831 = vsel %vm825, %v812, %v814
      %v832 = vsel %vm825, %v810, %v812
      %v833 = vsel %vm825, %v824, %v810
      %834 = vst [vmem:[#allocation2 + $0x180] sm:$0xf] %v832
      %835 = vst [vmem:[#allocation2 + $0x188] sm:$0xf] %v831
      %836 = vst [vmem:[#allocation2 + $0x190] sm:$0xf] %v830
      %837 = vst [vmem:[#allocation2 + $0x198] sm:$0xf] %v829
      %838 = vst [vmem:[#allocation2 + $0x1a0] sm:$0xf] %v828
      %839 = vst [vmem:[#allocation2 + $0x1a8] sm:$0xf] %v827
      %840 = vst [vmem:[#allocation2 + $0x1b0] sm:$0xf] %v826
      %841 = vst [vmem:[#allocation2 + $0x1b8] sm:$0xf] %v833
      %842 = vrot.lane.b32.xlu0 %v276, 17
      %v843 = vpop.permute.xlu0 %842
      %844 = vrot.lane.b32.xlu0 %v284, 17
      %v845 = vpop.permute.xlu0 %844
      %846 = vrot.lane.b32.xlu0 %v277, 17
      %v847 = vpop.permute.xlu0 %846
      %848 = vrot.lane.b32.xlu0 %v285, 17
      %v849 = vpop.permute.xlu0 %848
      %850 = vrot.lane.b32.xlu0 %v278, 17
      %v851 = vpop.permute.xlu0 %850
      %852 = vrot.lane.b32.xlu0 %v286, 17
      %v853 = vpop.permute.xlu0 %852
      %854 = vrot.lane.b32.xlu0 %v279, 17
      %v855 = vpop.permute.xlu0 %854
      %856 = vrot.lane.b32.xlu0 %v287, 17
      %v857 = vpop.permute.xlu0 %856
      %vm858 = vcmp.lt.s32.totalorder %v317, 17
      %v859 = vsel %vm858, %v855, %v857
      %v860 = vsel %vm858, %v853, %v855
      %v861 = vsel %vm858, %v851, %v853
      %v862 = vsel %vm858, %v849, %v851
      %v863 = vsel %vm858, %v847, %v849
      %v864 = vsel %vm858, %v845, %v847
      %v865 = vsel %vm858, %v843, %v845
      %v866 = vsel %vm858, %v857, %v843
      %v875 = vrot.slane %v865, 4
      %v876 = vrot.slane %v864, 4
      %v877 = vrot.slane %v863, 4
      %v878 = vrot.slane %v862, 4
      %v879 = vrot.slane %v861, 4
      %v880 = vrot.slane %v860, 4
      %v881 = vrot.slane %v859, 4
      %v882 = vrot.slane %v866, 4
      %891 = vst [vmem:[#allocation2 + $0x180] sm:$0xf0] %v875
      %892 = vst [vmem:[#allocation2 + $0x188] sm:$0xf0] %v876
      %893 = vst [vmem:[#allocation2 + $0x190] sm:$0xf0] %v877
      %894 = vst [vmem:[#allocation2 + $0x198] sm:$0xf0] %v878
      %895 = vst [vmem:[#allocation2 + $0x1a0] sm:$0xf0] %v879
      %896 = vst [vmem:[#allocation2 + $0x1a8] sm:$0xf0] %v880
      %897 = vst [vmem:[#allocation2 + $0x1b0] sm:$0xf0] %v881
      %898 = vst [vmem:[#allocation2 + $0x1b8] sm:$0xf0] %v882
      %899 = vrot.lane.b32.xlu0 %v276, 16
      %v900 = vpop.permute.xlu0 %899
      %901 = vrot.lane.b32.xlu0 %v284, 16
      %v902 = vpop.permute.xlu0 %901
      %903 = vrot.lane.b32.xlu0 %v277, 16
      %v904 = vpop.permute.xlu0 %903
      %905 = vrot.lane.b32.xlu0 %v285, 16
      %v906 = vpop.permute.xlu0 %905
      %907 = vrot.lane.b32.xlu0 %v278, 16
      %v908 = vpop.permute.xlu0 %907
      %909 = vrot.lane.b32.xlu0 %v286, 16
      %v910 = vpop.permute.xlu0 %909
      %911 = vrot.lane.b32.xlu0 %v279, 16
      %v912 = vpop.permute.xlu0 %911
      %913 = vrot.lane.b32.xlu0 %v287, 16
      %v914 = vpop.permute.xlu0 %913
      %vm915 = vcmp.lt.s32.totalorder %v317, 16
      %v916 = vsel %vm915, %v912, %v914
      %v917 = vsel %vm915, %v910, %v912
      %v918 = vsel %vm915, %v908, %v910
      %v919 = vsel %vm915, %v906, %v908
      %v920 = vsel %vm915, %v904, %v906
      %v921 = vsel %vm915, %v902, %v904
      %v922 = vsel %vm915, %v900, %v902
      %v923 = vsel %vm915, %v914, %v900
      %924 = vst [vmem:[#allocation2 + $0x1c0] sm:$0xf] %v922
      %925 = vst [vmem:[#allocation2 + $0x1c8] sm:$0xf] %v921
      %926 = vst [vmem:[#allocation2 + $0x1d0] sm:$0xf] %v920
      %927 = vst [vmem:[#allocation2 + $0x1d8] sm:$0xf] %v919
      %928 = vst [vmem:[#allocation2 + $0x1e0] sm:$0xf] %v918
      %929 = vst [vmem:[#allocation2 + $0x1e8] sm:$0xf] %v917
      %930 = vst [vmem:[#allocation2 + $0x1f0] sm:$0xf] %v916
      %931 = vst [vmem:[#allocation2 + $0x1f8] sm:$0xf] %v923
      %932 = vrot.lane.b32.xlu0 %v276, 8
      %v933 = vpop.permute.xlu0 %932
      %934 = vrot.lane.b32.xlu0 %v284, 8
      %v935 = vpop.permute.xlu0 %934
      %936 = vrot.lane.b32.xlu0 %v277, 8
      %v937 = vpop.permute.xlu0 %936
      %938 = vrot.lane.b32.xlu0 %v285, 8
      %v939 = vpop.permute.xlu0 %938
      %940 = vrot.lane.b32.xlu0 %v278, 8
      %v941 = vpop.permute.xlu0 %940
      %942 = vrot.lane.b32.xlu0 %v286, 8
      %v943 = vpop.permute.xlu0 %942
      %944 = vrot.lane.b32.xlu0 %v279, 8
      %v945 = vpop.permute.xlu0 %944
      %946 = vrot.lane.b32.xlu0 %v287, 8
      %v947 = vpop.permute.xlu0 %946
      %vm948 = vcmp.lt.s32.totalorder %v317, 8
      %v949 = vsel %vm948, %v945, %v947
      %v950 = vsel %vm948, %v943, %v945
      %v951 = vsel %vm948, %v941, %v943
      %v952 = vsel %vm948, %v939, %v941
      %v953 = vsel %vm948, %v937, %v939
      %v954 = vsel %vm948, %v935, %v937
      %v955 = vsel %vm948, %v933, %v935
      %v956 = vsel %vm948, %v947, %v933
      %v965 = vrot.slane %v955, 4
      %v966 = vrot.slane %v954, 4
      %v967 = vrot.slane %v953, 4
      %v968 = vrot.slane %v952, 4
      %v969 = vrot.slane %v951, 4
      %v970 = vrot.slane %v950, 4
      %v971 = vrot.slane %v949, 4
      %v972 = vrot.slane %v956, 4
      %981 = vst [vmem:[#allocation2 + $0x1c0] sm:$0xf0] %v965
      %982 = vst [vmem:[#allocation2 + $0x1c8] sm:$0xf0] %v966
      %983 = vst [vmem:[#allocation2 + $0x1d0] sm:$0xf0] %v967
      %984 = vst [vmem:[#allocation2 + $0x1d8] sm:$0xf0] %v968
      %985 = vst [vmem:[#allocation2 + $0x1e0] sm:$0xf0] %v969
      %986 = vst [vmem:[#allocation2 + $0x1e8] sm:$0xf0] %v970
      %987 = vst [vmem:[#allocation2 + $0x1f0] sm:$0xf0] %v971
      %988 = vst [vmem:[#allocation2 + $0x1f8] sm:$0xf0] %v972
      %989 = vrot.lane.b32.xlu0 %v276, 7
      %v990 = vpop.permute.xlu0 %989
      %991 = vrot.lane.b32.xlu0 %v284, 7
      %v992 = vpop.permute.xlu0 %991
      %993 = vrot.lane.b32.xlu0 %v277, 7
      %v994 = vpop.permute.xlu0 %993
      %995 = vrot.lane.b32.xlu0 %v285, 7
      %v996 = vpop.permute.xlu0 %995
      %997 = vrot.lane.b32.xlu0 %v278, 7
      %v998 = vpop.permute.xlu0 %997
      %999 = vrot.lane.b32.xlu0 %v286, 7
      %v1000 = vpop.permute.xlu0 %999
      %1001 = vrot.lane.b32.xlu0 %v279, 7
      %v1002 = vpop.permute.xlu0 %1001
      %1003 = vrot.lane.b32.xlu0 %v287, 7
      %v1004 = vpop.permute.xlu0 %1003
      %vm1005 = vcmp.lt.s32.totalorder %v317, 7
      %v1006 = vsel %vm1005, %v1002, %v1004
      %v1007 = vsel %vm1005, %v1000, %v1002
      %v1008 = vsel %vm1005, %v998, %v1000
      %v1009 = vsel %vm1005, %v996, %v998
      %v1010 = vsel %vm1005, %v994, %v996
      %v1011 = vsel %vm1005, %v992, %v994
      %v1012 = vsel %vm1005, %v990, %v992
      %v1013 = vsel %vm1005, %v1004, %v990
      %1014 = vst [vmem:[#allocation2 + $0x200] sm:$0xf] %v1012
      %1015 = vst [vmem:[#allocation2 + $0x208] sm:$0xf] %v1011
      %1016 = vst [vmem:[#allocation2 + $0x210] sm:$0xf] %v1010
      %1017 = vst [vmem:[#allocation2 + $0x218] sm:$0xf] %v1009
      %1018 = vst [vmem:[#allocation2 + $0x220] sm:$0xf] %v1008
      %1019 = vst [vmem:[#allocation2 + $0x228] sm:$0xf] %v1007
      %1020 = vst [vmem:[#allocation2 + $0x230] sm:$0xf] %v1006
      %1021 = vst [vmem:[#allocation2 + $0x238] sm:$0xf] %v1013
      %1022 = vrot.lane.b32.xlu0 %v276, 6
      %v1023 = vpop.permute.xlu0 %1022
      %1024 = vrot.lane.b32.xlu0 %v284, 6
      %v1025 = vpop.permute.xlu0 %1024
      %1026 = vrot.lane.b32.xlu0 %v277, 6
      %v1027 = vpop.permute.xlu0 %1026
      %1028 = vrot.lane.b32.xlu0 %v285, 6
      %v1029 = vpop.permute.xlu0 %1028
      %1030 = vrot.lane.b32.xlu0 %v278, 6
      %v1031 = vpop.permute.xlu0 %1030
      %1032 = vrot.lane.b32.xlu0 %v286, 6
      %v1033 = vpop.permute.xlu0 %1032
      %1034 = vrot.lane.b32.xlu0 %v279, 6
      %v1035 = vpop.permute.xlu0 %1034
      %1036 = vrot.lane.b32.xlu0 %v287, 6
      %v1037 = vpop.permute.xlu0 %1036
      %vm1038 = vcmp.lt.s32.totalorder %v317, 6
      %v1039 = vsel %vm1038, %v1035, %v1037
      %v1040 = vsel %vm1038, %v1033, %v1035
      %v1041 = vsel %vm1038, %v1031, %v1033
      %v1042 = vsel %vm1038, %v1029, %v1031
      %v1043 = vsel %vm1038, %v1027, %v1029
      %v1044 = vsel %vm1038, %v1025, %v1027
      %v1045 = vsel %vm1038, %v1023, %v1025
      %v1046 = vsel %vm1038, %v1037, %v1023
      %v1055 = vrot.slane %v1045, 4
      %v1056 = vrot.slane %v1044, 4
      %v1057 = vrot.slane %v1043, 4
      %v1058 = vrot.slane %v1042, 4
      %v1059 = vrot.slane %v1041, 4
      %v1060 = vrot.slane %v1040, 4
      %v1061 = vrot.slane %v1039, 4
      %v1062 = vrot.slane %v1046, 4
      %1071 = vst [vmem:[#allocation2 + $0x200] sm:$0xf0] %v1055
      %1072 = vst [vmem:[#allocation2 + $0x208] sm:$0xf0] %v1056
      %1073 = vst [vmem:[#allocation2 + $0x210] sm:$0xf0] %v1057
      %1074 = vst [vmem:[#allocation2 + $0x218] sm:$0xf0] %v1058
      %1075 = vst [vmem:[#allocation2 + $0x220] sm:$0xf0] %v1059
      %1076 = vst [vmem:[#allocation2 + $0x228] sm:$0xf0] %v1060
      %1077 = vst [vmem:[#allocation2 + $0x230] sm:$0xf0] %v1061
      %1078 = vst [vmem:[#allocation2 + $0x238] sm:$0xf0] %v1062
      %1079 = vrot.lane.b32.xlu0 %v276, 56
      %v1080 = vpop.permute.xlu0 %1079
      %1081 = vrot.lane.b32.xlu0 %v284, 56
      %v1082 = vpop.permute.xlu0 %1081
      %1083 = vrot.lane.b32.xlu0 %v277, 56
      %v1084 = vpop.permute.xlu0 %1083
      %1085 = vrot.lane.b32.xlu0 %v285, 56
      %v1086 = vpop.permute.xlu0 %1085
      %1087 = vrot.lane.b32.xlu0 %v278, 56
      %v1088 = vpop.permute.xlu0 %1087
      %1089 = vrot.lane.b32.xlu0 %v286, 56
      %v1090 = vpop.permute.xlu0 %1089
      %1091 = vrot.lane.b32.xlu0 %v279, 56
      %v1092 = vpop.permute.xlu0 %1091
      %1093 = vrot.lane.b32.xlu0 %v287, 56
      %v1094 = vpop.permute.xlu0 %1093
      %vm1095 = vcmp.lt.s32.totalorder %v317, 56
      %v1096 = vsel %vm1095, %v1092, %v1094
      %v1097 = vsel %vm1095, %v1090, %v1092
      %v1098 = vsel %vm1095, %v1088, %v1090
      %v1099 = vsel %vm1095, %v1086, %v1088
      %v1100 = vsel %vm1095, %v1084, %v1086
      %v1101 = vsel %vm1095, %v1082, %v1084
      %v1102 = vsel %vm1095, %v1080, %v1082
      %v1103 = vsel %vm1095, %v1094, %v1080
      %1104 = vst [vmem:[#allocation2 + $0x240] sm:$0xf] %v1101
      %1105 = vst [vmem:[#allocation2 + $0x248] sm:$0xf] %v1100
      %1106 = vst [vmem:[#allocation2 + $0x250] sm:$0xf] %v1099
      %1107 = vst [vmem:[#allocation2 + $0x258] sm:$0xf] %v1098
      %1108 = vst [vmem:[#allocation2 + $0x260] sm:$0xf] %v1097
      %1109 = vst [vmem:[#allocation2 + $0x268] sm:$0xf] %v1096
      %1110 = vst [vmem:[#allocation2 + $0x270] sm:$0xf] %v1103
      %1111 = vst [vmem:[#allocation2 + $0x278] sm:$0xf] %v1102
      %1112 = vrot.lane.b32.xlu0 %v276, 55
      %v1113 = vpop.permute.xlu0 %1112
      %1114 = vrot.lane.b32.xlu0 %v284, 55
      %v1115 = vpop.permute.xlu0 %1114
      %1116 = vrot.lane.b32.xlu0 %v277, 55
      %v1117 = vpop.permute.xlu0 %1116
      %1118 = vrot.lane.b32.xlu0 %v285, 55
      %v1119 = vpop.permute.xlu0 %1118
      %1120 = vrot.lane.b32.xlu0 %v278, 55
      %v1121 = vpop.permute.xlu0 %1120
      %1122 = vrot.lane.b32.xlu0 %v286, 55
      %v1123 = vpop.permute.xlu0 %1122
      %1124 = vrot.lane.b32.xlu0 %v279, 55
      %v1125 = vpop.permute.xlu0 %1124
      %1126 = vrot.lane.b32.xlu0 %v287, 55
      %v1127 = vpop.permute.xlu0 %1126
      %vm1128 = vcmp.lt.s32.totalorder %v317, 55
      %v1129 = vsel %vm1128, %v1125, %v1127
      %v1130 = vsel %vm1128, %v1123, %v1125
      %v1131 = vsel %vm1128, %v1121, %v1123
      %v1132 = vsel %vm1128, %v1119, %v1121
      %v1133 = vsel %vm1128, %v1117, %v1119
      %v1134 = vsel %vm1128, %v1115, %v1117
      %v1135 = vsel %vm1128, %v1113, %v1115
      %v1136 = vsel %vm1128, %v1127, %v1113
      %v1145 = vrot.slane %v1134, 4
      %v1146 = vrot.slane %v1133, 4
      %v1147 = vrot.slane %v1132, 4
      %v1148 = vrot.slane %v1131, 4
      %v1149 = vrot.slane %v1130, 4
      %v1150 = vrot.slane %v1129, 4
      %v1151 = vrot.slane %v1136, 4
      %v1152 = vrot.slane %v1135, 4
      %1161 = vst [vmem:[#allocation2 + $0x240] sm:$0xf0] %v1145
      %1162 = vst [vmem:[#allocation2 + $0x248] sm:$0xf0] %v1146
      %1163 = vst [vmem:[#allocation2 + $0x250] sm:$0xf0] %v1147
      %1164 = vst [vmem:[#allocation2 + $0x258] sm:$0xf0] %v1148
      %1165 = vst [vmem:[#allocation2 + $0x260] sm:$0xf0] %v1149
      %1166 = vst [vmem:[#allocation2 + $0x268] sm:$0xf0] %v1150
      %1167 = vst [vmem:[#allocation2 + $0x270] sm:$0xf0] %v1151
      %1168 = vst [vmem:[#allocation2 + $0x278] sm:$0xf0] %v1152
      %1169 = vrot.lane.b32.xlu0 %v276, 54
      %v1170 = vpop.permute.xlu0 %1169
      %1171 = vrot.lane.b32.xlu0 %v284, 54
      %v1172 = vpop.permute.xlu0 %1171
      %1173 = vrot.lane.b32.xlu0 %v277, 54
      %v1174 = vpop.permute.xlu0 %1173
      %1175 = vrot.lane.b32.xlu0 %v285, 54
      %v1176 = vpop.permute.xlu0 %1175
      %1177 = vrot.lane.b32.xlu0 %v278, 54
      %v1178 = vpop.permute.xlu0 %1177
      %1179 = vrot.lane.b32.xlu0 %v286, 54
      %v1180 = vpop.permute.xlu0 %1179
      %1181 = vrot.lane.b32.xlu0 %v279, 54
      %v1182 = vpop.permute.xlu0 %1181
      %1183 = vrot.lane.b32.xlu0 %v287, 54
      %v1184 = vpop.permute.xlu0 %1183
      %vm1185 = vcmp.lt.s32.totalorder %v317, 54
      %v1186 = vsel %vm1185, %v1182, %v1184
      %v1187 = vsel %vm1185, %v1180, %v1182
      %v1188 = vsel %vm1185, %v1178, %v1180
      %v1189 = vsel %vm1185, %v1176, %v1178
      %v1190 = vsel %vm1185, %v1174, %v1176
      %v1191 = vsel %vm1185, %v1172, %v1174
      %v1192 = vsel %vm1185, %v1170, %v1172
      %v1193 = vsel %vm1185, %v1184, %v1170
      %1194 = vst [vmem:[#allocation2 + $0x280] sm:$0xf] %v1191
      %1195 = vst [vmem:[#allocation2 + $0x288] sm:$0xf] %v1190
      %1196 = vst [vmem:[#allocation2 + $0x290] sm:$0xf] %v1189
      %1197 = vst [vmem:[#allocation2 + $0x298] sm:$0xf] %v1188
      %1198 = vst [vmem:[#allocation2 + $0x2a0] sm:$0xf] %v1187
      %1199 = vst [vmem:[#allocation2 + $0x2a8] sm:$0xf] %v1186
      %1200 = vst [vmem:[#allocation2 + $0x2b0] sm:$0xf] %v1193
      %1201 = vst [vmem:[#allocation2 + $0x2b8] sm:$0xf] %v1192
      %1202 = vrot.lane.b32.xlu0 %v276, 46
      %v1203 = vpop.permute.xlu0 %1202
      %1204 = vrot.lane.b32.xlu0 %v284, 46
      %v1205 = vpop.permute.xlu0 %1204
      %1206 = vrot.lane.b32.xlu0 %v277, 46
      %v1207 = vpop.permute.xlu0 %1206
      %1208 = vrot.lane.b32.xlu0 %v285, 46
      %v1209 = vpop.permute.xlu0 %1208
      %1210 = vrot.lane.b32.xlu0 %v278, 46
      %v1211 = vpop.permute.xlu0 %1210
      %1212 = vrot.lane.b32.xlu0 %v286, 46
      %v1213 = vpop.permute.xlu0 %1212
      %1214 = vrot.lane.b32.xlu0 %v279, 46
      %v1215 = vpop.permute.xlu0 %1214
      %1216 = vrot.lane.b32.xlu0 %v287, 46
      %v1217 = vpop.permute.xlu0 %1216
      %vm1218 = vcmp.lt.s32.totalorder %v317, 46
      %v1219 = vsel %vm1218, %v1215, %v1217
      %v1220 = vsel %vm1218, %v1213, %v1215
      %v1221 = vsel %vm1218, %v1211, %v1213
      %v1222 = vsel %vm1218, %v1209, %v1211
      %v1223 = vsel %vm1218, %v1207, %v1209
      %v1224 = vsel %vm1218, %v1205, %v1207
      %v1225 = vsel %vm1218, %v1203, %v1205
      %v1226 = vsel %vm1218, %v1217, %v1203
      %v1235 = vrot.slane %v1224, 4
      %v1236 = vrot.slane %v1223, 4
      %v1237 = vrot.slane %v1222, 4
      %v1238 = vrot.slane %v1221, 4
      %v1239 = vrot.slane %v1220, 4
      %v1240 = vrot.slane %v1219, 4
      %v1241 = vrot.slane %v1226, 4
      %v1242 = vrot.slane %v1225, 4
      %1251 = vst [vmem:[#allocation2 + $0x280] sm:$0xf0] %v1235
      %1252 = vst [vmem:[#allocation2 + $0x288] sm:$0xf0] %v1236
      %1253 = vst [vmem:[#allocation2 + $0x290] sm:$0xf0] %v1237
      %1254 = vst [vmem:[#allocation2 + $0x298] sm:$0xf0] %v1238
      %1255 = vst [vmem:[#allocation2 + $0x2a0] sm:$0xf0] %v1239
      %1256 = vst [vmem:[#allocation2 + $0x2a8] sm:$0xf0] %v1240
      %1257 = vst [vmem:[#allocation2 + $0x2b0] sm:$0xf0] %v1241
      %1258 = vst [vmem:[#allocation2 + $0x2b8] sm:$0xf0] %v1242
      %1259 = vrot.lane.b32.xlu0 %v276, 45
      %v1260 = vpop.permute.xlu0 %1259
      %1261 = vrot.lane.b32.xlu0 %v284, 45
      %v1262 = vpop.permute.xlu0 %1261
      %1263 = vrot.lane.b32.xlu0 %v277, 45
      %v1264 = vpop.permute.xlu0 %1263
      %1265 = vrot.lane.b32.xlu0 %v285, 45
      %v1266 = vpop.permute.xlu0 %1265
      %1267 = vrot.lane.b32.xlu0 %v278, 45
      %v1268 = vpop.permute.xlu0 %1267
      %1269 = vrot.lane.b32.xlu0 %v286, 45
      %v1270 = vpop.permute.xlu0 %1269
      %1271 = vrot.lane.b32.xlu0 %v279, 45
      %v1272 = vpop.permute.xlu0 %1271
      %1273 = vrot.lane.b32.xlu0 %v287, 45
      %v1274 = vpop.permute.xlu0 %1273
      %vm1275 = vcmp.lt.s32.totalorder %v317, 45
      %v1276 = vsel %vm1275, %v1272, %v1274
      %v1277 = vsel %vm1275, %v1270, %v1272
      %v1278 = vsel %vm1275, %v1268, %v1270
      %v1279 = vsel %vm1275, %v1266, %v1268
      %v1280 = vsel %vm1275, %v1264, %v1266
      %v1281 = vsel %vm1275, %v1262, %v1264
      %v1282 = vsel %vm1275, %v1260, %v1262
      %v1283 = vsel %vm1275, %v1274, %v1260
      %1284 = vst [vmem:[#allocation2 + $0x2c0] sm:$0xf] %v1281
      %1285 = vst [vmem:[#allocation2 + $0x2c8] sm:$0xf] %v1280
      %1286 = vst [vmem:[#allocation2 + $0x2d0] sm:$0xf] %v1279
      %1287 = vst [vmem:[#allocation2 + $0x2d8] sm:$0xf] %v1278
      %1288 = vst [vmem:[#allocation2 + $0x2e0] sm:$0xf] %v1277
      %1289 = vst [vmem:[#allocation2 + $0x2e8] sm:$0xf] %v1276
      %1290 = vst [vmem:[#allocation2 + $0x2f0] sm:$0xf] %v1283
      %1291 = vst [vmem:[#allocation2 + $0x2f8] sm:$0xf] %v1282
      %1292 = vrot.lane.b32.xlu0 %v276, 44
      %v1293 = vpop.permute.xlu0 %1292
      %1294 = vrot.lane.b32.xlu0 %v284, 44
      %v1295 = vpop.permute.xlu0 %1294
      %1296 = vrot.lane.b32.xlu0 %v277, 44
      %v1297 = vpop.permute.xlu0 %1296
      %1298 = vrot.lane.b32.xlu0 %v285, 44
      %v1299 = vpop.permute.xlu0 %1298
      %1300 = vrot.lane.b32.xlu0 %v278, 44
      %v1301 = vpop.permute.xlu0 %1300
      %1302 = vrot.lane.b32.xlu0 %v286, 44
      %v1303 = vpop.permute.xlu0 %1302
      %1304 = vrot.lane.b32.xlu0 %v279, 44
      %v1305 = vpop.permute.xlu0 %1304
      %1306 = vrot.lane.b32.xlu0 %v287, 44
      %v1307 = vpop.permute.xlu0 %1306
      %vm1308 = vcmp.lt.s32.totalorder %v317, 44
      %v1309 = vsel %vm1308, %v1305, %v1307
      %v1310 = vsel %vm1308, %v1303, %v1305
      %v1311 = vsel %vm1308, %v1301, %v1303
      %v1312 = vsel %vm1308, %v1299, %v1301
      %v1313 = vsel %vm1308, %v1297, %v1299
      %v1314 = vsel %vm1308, %v1295, %v1297
      %v1315 = vsel %vm1308, %v1293, %v1295
      %v1316 = vsel %vm1308, %v1307, %v1293
      %v1325 = vrot.slane %v1314, 4
      %v1326 = vrot.slane %v1313, 4
      %v1327 = vrot.slane %v1312, 4
      %v1328 = vrot.slane %v1311, 4
      %v1329 = vrot.slane %v1310, 4
      %v1330 = vrot.slane %v1309, 4
      %v1331 = vrot.slane %v1316, 4
      %v1332 = vrot.slane %v1315, 4
      %1341 = vst [vmem:[#allocation2 + $0x2c0] sm:$0xf0] %v1325
      %1342 = vst [vmem:[#allocation2 + $0x2c8] sm:$0xf0] %v1326
      %1343 = vst [vmem:[#allocation2 + $0x2d0] sm:$0xf0] %v1327
      %1344 = vst [vmem:[#allocation2 + $0x2d8] sm:$0xf0] %v1328
      %1345 = vst [vmem:[#allocation2 + $0x2e0] sm:$0xf0] %v1329
      %1346 = vst [vmem:[#allocation2 + $0x2e8] sm:$0xf0] %v1330
      %1347 = vst [vmem:[#allocation2 + $0x2f0] sm:$0xf0] %v1331
      %1348 = vst [vmem:[#allocation2 + $0x2f8] sm:$0xf0] %v1332
      %1349 = vrot.lane.b32.xlu0 %v276, 36
      %v1350 = vpop.permute.xlu0 %1349
      %1351 = vrot.lane.b32.xlu0 %v284, 36
      %v1352 = vpop.permute.xlu0 %1351
      %1353 = vrot.lane.b32.xlu0 %v277, 36
      %v1354 = vpop.permute.xlu0 %1353
      %1355 = vrot.lane.b32.xlu0 %v285, 36
      %v1356 = vpop.permute.xlu0 %1355
      %1357 = vrot.lane.b32.xlu0 %v278, 36
      %v1358 = vpop.permute.xlu0 %1357
      %1359 = vrot.lane.b32.xlu0 %v286, 36
      %v1360 = vpop.permute.xlu0 %1359
      %1361 = vrot.lane.b32.xlu0 %v279, 36
      %v1362 = vpop.permute.xlu0 %1361
      %1363 = vrot.lane.b32.xlu0 %v287, 36
      %v1364 = vpop.permute.xlu0 %1363
      %vm1365 = vcmp.lt.s32.totalorder %v317, 36
      %v1366 = vsel %vm1365, %v1362, %v1364
      %v1367 = vsel %vm1365, %v1360, %v1362
      %v1368 = vsel %vm1365, %v1358, %v1360
      %v1369 = vsel %vm1365, %v1356, %v1358
      %v1370 = vsel %vm1365, %v1354, %v1356
      %v1371 = vsel %vm1365, %v1352, %v1354
      %v1372 = vsel %vm1365, %v1350, %v1352
      %v1373 = vsel %vm1365, %v1364, %v1350
      %1374 = vst [vmem:[#allocation2 + $0x300] sm:$0xf] %v1371
      %1375 = vst [vmem:[#allocation2 + $0x308] sm:$0xf] %v1370
      %1376 = vst [vmem:[#allocation2 + $0x310] sm:$0xf] %v1369
      %1377 = vst [vmem:[#allocation2 + $0x318] sm:$0xf] %v1368
      %1378 = vst [vmem:[#allocation2 + $0x320] sm:$0xf] %v1367
      %1379 = vst [vmem:[#allocation2 + $0x328] sm:$0xf] %v1366
      %1380 = vst [vmem:[#allocation2 + $0x330] sm:$0xf] %v1373
      %1381 = vst [vmem:[#allocation2 + $0x338] sm:$0xf] %v1372
      %1382 = vrot.lane.b32.xlu0 %v276, 35
      %v1383 = vpop.permute.xlu0 %1382
      %1384 = vrot.lane.b32.xlu0 %v284, 35
      %v1385 = vpop.permute.xlu0 %1384
      %1386 = vrot.lane.b32.xlu0 %v277, 35
      %v1387 = vpop.permute.xlu0 %1386
      %1388 = vrot.lane.b32.xlu0 %v285, 35
      %v1389 = vpop.permute.xlu0 %1388
      %1390 = vrot.lane.b32.xlu0 %v278, 35
      %v1391 = vpop.permute.xlu0 %1390
      %1392 = vrot.lane.b32.xlu0 %v286, 35
      %v1393 = vpop.permute.xlu0 %1392
      %1394 = vrot.lane.b32.xlu0 %v279, 35
      %v1395 = vpop.permute.xlu0 %1394
      %1396 = vrot.lane.b32.xlu0 %v287, 35
      %v1397 = vpop.permute.xlu0 %1396
      %vm1398 = vcmp.lt.s32.totalorder %v317, 35
      %v1399 = vsel %vm1398, %v1395, %v1397
      %v1400 = vsel %vm1398, %v1393, %v1395
      %v1401 = vsel %vm1398, %v1391, %v1393
      %v1402 = vsel %vm1398, %v1389, %v1391
      %v1403 = vsel %vm1398, %v1387, %v1389
      %v1404 = vsel %vm1398, %v1385, %v1387
      %v1405 = vsel %vm1398, %v1383, %v1385
      %v1406 = vsel %vm1398, %v1397, %v1383
      %v1415 = vrot.slane %v1404, 4
      %v1416 = vrot.slane %v1403, 4
      %v1417 = vrot.slane %v1402, 4
      %v1418 = vrot.slane %v1401, 4
      %v1419 = vrot.slane %v1400, 4
      %v1420 = vrot.slane %v1399, 4
      %v1421 = vrot.slane %v1406, 4
      %v1422 = vrot.slane %v1405, 4
      %1431 = vst [vmem:[#allocation2 + $0x300] sm:$0xf0] %v1415
      %1432 = vst [vmem:[#allocation2 + $0x308] sm:$0xf0] %v1416
      %1433 = vst [vmem:[#allocation2 + $0x310] sm:$0xf0] %v1417
      %1434 = vst [vmem:[#allocation2 + $0x318] sm:$0xf0] %v1418
      %1435 = vst [vmem:[#allocation2 + $0x320] sm:$0xf0] %v1419
      %1436 = vst [vmem:[#allocation2 + $0x328] sm:$0xf0] %v1420
      %1437 = vst [vmem:[#allocation2 + $0x330] sm:$0xf0] %v1421
      %1438 = vst [vmem:[#allocation2 + $0x338] sm:$0xf0] %v1422
      %1439 = vrot.lane.b32.xlu0 %v276, 34
      %v1440 = vpop.permute.xlu0 %1439
      %1441 = vrot.lane.b32.xlu0 %v284, 34
      %v1442 = vpop.permute.xlu0 %1441
      %1443 = vrot.lane.b32.xlu0 %v277, 34
      %v1444 = vpop.permute.xlu0 %1443
      %1445 = vrot.lane.b32.xlu0 %v285, 34
      %v1446 = vpop.permute.xlu0 %1445
      %1447 = vrot.lane.b32.xlu0 %v278, 34
      %v1448 = vpop.permute.xlu0 %1447
      %1449 = vrot.lane.b32.xlu0 %v286, 34
      %v1450 = vpop.permute.xlu0 %1449
      %1451 = vrot.lane.b32.xlu0 %v279, 34
      %v1452 = vpop.permute.xlu0 %1451
      %1453 = vrot.lane.b32.xlu0 %v287, 34
      %v1454 = vpop.permute.xlu0 %1453
      %vm1455 = vcmp.lt.s32.totalorder %v317, 34
      %v1456 = vsel %vm1455, %v1452, %v1454
      %v1457 = vsel %vm1455, %v1450, %v1452
      %v1458 = vsel %vm1455, %v1448, %v1450
      %v1459 = vsel %vm1455, %v1446, %v1448
      %v1460 = vsel %vm1455, %v1444, %v1446
      %v1461 = vsel %vm1455, %v1442, %v1444
      %v1462 = vsel %vm1455, %v1440, %v1442
      %v1463 = vsel %vm1455, %v1454, %v1440
      %1464 = vst [vmem:[#allocation2 + $0x340] sm:$0xf] %v1461
      %1465 = vst [vmem:[#allocation2 + $0x348] sm:$0xf] %v1460
      %1466 = vst [vmem:[#allocation2 + $0x350] sm:$0xf] %v1459
      %1467 = vst [vmem:[#allocation2 + $0x358] sm:$0xf] %v1458
      %1468 = vst [vmem:[#allocation2 + $0x360] sm:$0xf] %v1457
      %1469 = vst [vmem:[#allocation2 + $0x368] sm:$0xf] %v1456
      %1470 = vst [vmem:[#allocation2 + $0x370] sm:$0xf] %v1463
      %1471 = vst [vmem:[#allocation2 + $0x378] sm:$0xf] %v1462
      %v1472 = vld [vmem:[%s1] sm:$0xff]
      %v1473 = vld [vmem:[#allocation2] sm:$0xff]
      %v1474 = vld [vmem:[#allocation2 + $0x8] sm:$0xff]
      %v1475 = vld [vmem:[#allocation2 + $0x10] sm:$0xff]
      %v1476 = vld [vmem:[#allocation2 + $0x18] sm:$0xff]
      %v1477 = vld [vmem:[#allocation2 + $0x20] sm:$0xff]
      %v1478 = vld [vmem:[#allocation2 + $0x28] sm:$0xff]
      %v1479 = vld [vmem:[#allocation2 + $0x30] sm:$0xff]
      %v1480 = vld [vmem:[#allocation2 + $0x38] sm:$0xff]
      %v1481 = vld [vmem:[#allocation2 + $0x40] sm:$0xff]
      %v1482 = vld [vmem:[#allocation2 + $0x48] sm:$0xff]
      %v1483 = vld [vmem:[#allocation2 + $0x50] sm:$0xff]
      %v1484 = vld [vmem:[#allocation2 + $0x58] sm:$0xff]
      %v1485 = vld [vmem:[#allocation2 + $0x60] sm:$0xff]
      %v1486 = vld [vmem:[#allocation2 + $0x68] sm:$0xff]
      %v1487 = vld [vmem:[#allocation2 + $0x70] sm:$0xff]
      %v1488 = vld [vmem:[#allocation2 + $0x78] sm:$0xff]
      %v1489 = vld [vmem:[#allocation2 + $0x80] sm:$0xff]
      %v1490 = vld [vmem:[#allocation2 + $0x88] sm:$0xff]
      %v1491 = vld [vmem:[#allocation2 + $0x90] sm:$0xff]
      %v1492 = vld [vmem:[#allocation2 + $0x98] sm:$0xff]
      %v1493 = vld [vmem:[#allocation2 + $0xa0] sm:$0xff]
      %v1494 = vld [vmem:[#allocation2 + $0xa8] sm:$0xff]
      %v1495 = vld [vmem:[#allocation2 + $0xb0] sm:$0xff]
      %v1496 = vld [vmem:[#allocation2 + $0xb8] sm:$0xff]
      %v1497 = vld [vmem:[#allocation2 + $0xc0] sm:$0xff]
      %v1498 = vld [vmem:[#allocation2 + $0xc8] sm:$0xff]
      %v1499 = vld [vmem:[#allocation2 + $0xd0] sm:$0xff]
      %v1500 = vld [vmem:[#allocation2 + $0xd8] sm:$0xff]
      %v1501 = vld [vmem:[#allocation2 + $0xe0] sm:$0xff]
      %v1502 = vld [vmem:[#allocation2 + $0xe8] sm:$0xff]
      %v1503 = vld [vmem:[#allocation2 + $0xf0] sm:$0xff]
      %v1504 = vld [vmem:[#allocation2 + $0xf8] sm:$0xff]
      %v1505 = vld [vmem:[#allocation2 + $0x100] sm:$0xff]
      %v1506 = vld [vmem:[#allocation2 + $0x108] sm:$0xff]
      %v1507 = vld [vmem:[#allocation2 + $0x110] sm:$0xff]
      %v1508 = vld [vmem:[#allocation2 + $0x118] sm:$0xff]
      %v1509 = vld [vmem:[#allocation2 + $0x120] sm:$0xff]
      %v1510 = vld [vmem:[#allocation2 + $0x128] sm:$0xff]
      %v1511 = vld [vmem:[#allocation2 + $0x130] sm:$0xff]
      %v1512 = vld [vmem:[#allocation2 + $0x138] sm:$0xff]
      %v1513 = vld [vmem:[#allocation2 + $0x140] sm:$0xff]
      %v1514 = vld [vmem:[#allocation2 + $0x148] sm:$0xff]
      %v1515 = vld [vmem:[#allocation2 + $0x150] sm:$0xff]
      %v1516 = vld [vmem:[#allocation2 + $0x158] sm:$0xff]
      %v1517 = vld [vmem:[#allocation2 + $0x160] sm:$0xff]
      %v1518 = vld [vmem:[#allocation2 + $0x168] sm:$0xff]
      %v1519 = vld [vmem:[#allocation2 + $0x170] sm:$0xff]
      %v1520 = vld [vmem:[#allocation2 + $0x178] sm:$0xff]
      %v1521 = vld [vmem:[#allocation2 + $0x180] sm:$0xff]
      %v1522 = vld [vmem:[#allocation2 + $0x188] sm:$0xff]
      %v1523 = vld [vmem:[#allocation2 + $0x190] sm:$0xff]
      %v1524 = vld [vmem:[#allocation2 + $0x198] sm:$0xff]
      %v1525 = vld [vmem:[#allocation2 + $0x1a0] sm:$0xff]
      %v1526 = vld [vmem:[#allocation2 + $0x1a8] sm:$0xff]
      %v1527 = vld [vmem:[#allocation2 + $0x1b0] sm:$0xff]
      %v1528 = vld [vmem:[#allocation2 + $0x1b8] sm:$0xff]
      %v1529 = vld [vmem:[#allocation2 + $0x1c0] sm:$0xff]
      %v1530 = vld [vmem:[#allocation2 + $0x1c8] sm:$0xff]
      %v1531 = vld [vmem:[#allocation2 + $0x1d0] sm:$0xff]
      %v1532 = vld [vmem:[#allocation2 + $0x1d8] sm:$0xff]
      %v1533 = vld [vmem:[#allocation2 + $0x1e0] sm:$0xff]
      %v1534 = vld [vmem:[#allocation2 + $0x1e8] sm:$0xff]
      %v1535 = vld [vmem:[#allocation2 + $0x1f0] sm:$0xff]
      %v1536 = vld [vmem:[#allocation2 + $0x1f8] sm:$0xff]
      %v1537 = vld [vmem:[#allocation2 + $0x200] sm:$0xff]
      %v1538 = vld [vmem:[#allocation2 + $0x208] sm:$0xff]
      %v1539 = vld [vmem:[#allocation2 + $0x210] sm:$0xff]
      %v1540 = vld [vmem:[#allocation2 + $0x218] sm:$0xff]
      %v1541 = vld [vmem:[#allocation2 + $0x220] sm:$0xff]
      %v1542 = vld [vmem:[#allocation2 + $0x228] sm:$0xff]
      %v1543 = vld [vmem:[#allocation2 + $0x230] sm:$0xff]
      %v1544 = vld [vmem:[#allocation2 + $0x238] sm:$0xff]
      %v1545 = vld [vmem:[#allocation2 + $0x240] sm:$0xff]
      %v1546 = vld [vmem:[#allocation2 + $0x248] sm:$0xff]
      %v1547 = vld [vmem:[#allocation2 + $0x250] sm:$0xff]
      %v1548 = vld [vmem:[#allocation2 + $0x258] sm:$0xff]
      %v1549 = vld [vmem:[#allocation2 + $0x260] sm:$0xff]
      %v1550 = vld [vmem:[#allocation2 + $0x268] sm:$0xff]
      %v1551 = vld [vmem:[#allocation2 + $0x270] sm:$0xff]
      %v1552 = vld [vmem:[#allocation2 + $0x278] sm:$0xff]
      %v1553 = vld [vmem:[#allocation2 + $0x280] sm:$0xff]
      %v1554 = vld [vmem:[#allocation2 + $0x288] sm:$0xff]
      %v1555 = vld [vmem:[#allocation2 + $0x290] sm:$0xff]
      %v1556 = vld [vmem:[#allocation2 + $0x298] sm:$0xff]
      %v1557 = vld [vmem:[#allocation2 + $0x2a0] sm:$0xff]
      %v1558 = vld [vmem:[#allocation2 + $0x2a8] sm:$0xff]
      %v1559 = vld [vmem:[#allocation2 + $0x2b0] sm:$0xff]
      %v1560 = vld [vmem:[#allocation2 + $0x2b8] sm:$0xff]
      %v1561 = vld [vmem:[#allocation2 + $0x2c0] sm:$0xff]
      %v1562 = vld [vmem:[#allocation2 + $0x2c8] sm:$0xff]
      %v1563 = vld [vmem:[#allocation2 + $0x2d0] sm:$0xff]
      %v1564 = vld [vmem:[#allocation2 + $0x2d8] sm:$0xff]
      %v1565 = vld [vmem:[#allocation2 + $0x2e0] sm:$0xff]
      %v1566 = vld [vmem:[#allocation2 + $0x2e8] sm:$0xff]
      %v1567 = vld [vmem:[#allocation2 + $0x2f0] sm:$0xff]
      %v1568 = vld [vmem:[#allocation2 + $0x2f8] sm:$0xff]
      %v1569 = vld [vmem:[#allocation2 + $0x300] sm:$0xff]
      %v1570 = vld [vmem:[#allocation2 + $0x308] sm:$0xff]
      %v1571 = vld [vmem:[#allocation2 + $0x310] sm:$0xff]
      %v1572 = vld [vmem:[#allocation2 + $0x318] sm:$0xff]
      %v1573 = vld [vmem:[#allocation2 + $0x320] sm:$0xff]
      %v1574 = vld [vmem:[#allocation2 + $0x328] sm:$0xff]
      %v1575 = vld [vmem:[#allocation2 + $0x330] sm:$0xff]
      %v1576 = vld [vmem:[#allocation2 + $0x338] sm:$0xff]
      %v1577 = vld [vmem:[#allocation2 + $0x340] sm:$0xff]
      %v1578 = vld [vmem:[#allocation2 + $0x348] sm:$0xff]
      %v1579 = vld [vmem:[#allocation2 + $0x350] sm:$0xff]
      %v1580 = vld [vmem:[#allocation2 + $0x358] sm:$0xff]
      %v1581 = vld [vmem:[#allocation2 + $0x360] sm:$0xff]
      %v1582 = vld [vmem:[#allocation2 + $0x368] sm:$0xff]
      %v1583 = vld [vmem:[#allocation2 + $0x370] sm:$0xff]
      %v1584 = vld [vmem:[#allocation2 + $0x378] sm:$0xff]
      %v1585 = vld [vmem:[#allocation2 + $0x380] sm:$0xff]
      %v1586 = vld [vmem:[#allocation2 + $0x388] sm:$0xff]
      %v1587 = vld [vmem:[#allocation2 + $0x390] sm:$0xff]
      %v1588 = vld [vmem:[#allocation2 + $0x398] sm:$0xff]
      %v1589 = vld [vmem:[#allocation2 + $0x3a0] sm:$0xff]
      %v1590 = vld [vmem:[#allocation2 + $0x3a8] sm:$0xff]
      %v1591 = vld [vmem:[#allocation2 + $0x3b0] sm:$0xff]
      %v1592 = vld [vmem:[#allocation2 + $0x3b8] sm:$0xff]
      %v1593 = vld [vmem:[#allocation2 + $0x3c0] sm:$0xff]
      %v1594 = vld [vmem:[#allocation2 + $0x3c8] sm:$0xff]
      %v1595 = vld [vmem:[#allocation2 + $0x3d0] sm:$0xff]
      %v1596 = vld [vmem:[#allocation2 + $0x3d8] sm:$0xff]
      %v1597 = vld [vmem:[#allocation2 + $0x3e0] sm:$0xff]
      %v1598 = vld [vmem:[#allocation2 + $0x3e8] sm:$0xff]
      %v1599 = vld [vmem:[#allocation2 + $0x3f0] sm:$0xff]
      %v1600 = vld [vmem:[#allocation2 + $0x3f8] sm:$0xff]
      %v1601 = vld [vmem:[%s2] sm:$0xff]
      %1603 = vset.pattern.permute.xlu0 0
      %1604 = vperm.xlu0 %1603, %v1601
      %v1605 = vpop.permute.xlu0 %1604
      %1607 = vmatprep.subr.mxu0 %v1594
      %1608 = vmatpush1.msra.mxu0 %v1593
      %1609 = vmatprep.subr.mxu0 %v1586
      %1610 = vmatpush1.msra.mxu0 %v1585
      %1611 = vmatprep.subr.mxu0 %v1578
      %1612 = vmatpush1.msra.mxu0 %v1577
      %1613 = vmatprep.subr.mxu0 %v1570
      %1614 = vmatpush1.msra.mxu0 %v1569
      %1615 = vmatprep.subr.mxu0 %v1562
      %1616 = vmatpush1.msra.mxu0 %v1561
      %1617 = vmatprep.subr.mxu0 %v1554
      %1618 = vmatpush1.msra.mxu0 %v1553
      %1619 = vmatprep.subr.mxu0 %v1546
      %1620 = vmatpush1.msra.mxu0 %v1545
      %1621 = vmatprep.subr.mxu0 %v1538
      %1622 = vmatpush1.msra.mxu0 %v1537
      %1623 = vmatprep.subr.mxu0 %v1530
      %1624 = vmatpush1.msra.mxu0 %v1529
      %1625 = vmatprep.subr.mxu0 %v1522
      %1626 = vmatpush1.msra.mxu0 %v1521
      %1627 = vmatprep.subr.mxu0 %v1514
      %1628 = vmatpush1.msra.mxu0 %v1513
      %1629 = vmatprep.subr.mxu0 %v1506
      %1630 = vmatpush1.msra.mxu0 %v1505
      %1631 = vmatprep.subr.mxu0 %v1498
      %1632 = vmatpush1.msra.mxu0 %v1497
      %1633 = vmatprep.subr.mxu0 %v1490
      %1634 = vmatpush1.msra.mxu0 %v1489
      %1635 = vmatprep.subr.mxu0 %v1482
      %1636 = vmatpush1.msra.mxu0 %v1481
      %1637 = vmatprep.subr.mxu0 %v1474
      %1638 = vmatpush1.msra.mxu0 %v1473
      %1639 = vmatprep.subr.mxu0 0.0
      %1640 = vmatpush2.msra.mxu0 0.0
      %1641 = vmatprep.subr.mxu0 0.0
      %1642 = vmatpush2.msra.mxu0 0.0
      %1643 = vmatprep.subr.mxu0 0.0
      %1644 = vmatpush2.msra.mxu0 0.0
      %1645 = vmatprep.subr.mxu0 0.0
      %1646 = vmatpush2.msra.mxu0 0.0
      %1647 = vmatprep.subr.mxu0 0.0
      %1648 = vmatpush2.msra.mxu0 0.0
      %1649 = vmatprep.subr.mxu0 0.0
      %1650 = vmatpush2.msra.mxu0 0.0
      %1651 = vmatprep.subr.mxu0 0.0
      %1652 = vmatpush2.msra.mxu0 0.0
      %1653 = vmatprep.subr.mxu0 0.0
      %1654 = vmatpush2.msra.mxu0 0.0
      %1655 = vmatprep.subr.mxu0 0.0
      %1656 = vmatpush2.msra.mxu0 0.0
      %1657 = vmatprep.subr.mxu0 0.0
      %1658 = vmatpush2.msra.mxu0 0.0
      %1659 = vmatprep.subr.mxu0 0.0
      %1660 = vmatpush2.msra.mxu0 0.0
      %1661 = vmatprep.subr.mxu0 0.0
      %1662 = vmatpush2.msra.mxu0 0.0
      %1663 = vmatprep.subr.mxu0 0.0
      %1664 = vmatpush2.msra.mxu0 0.0
      %1665 = vmatprep.subr.mxu0 0.0
      %1666 = vmatpush2.msra.mxu0 0.0
      %1667 = vmatprep.subr.mxu0 0.0
      %1668 = vmatpush2.msra.mxu0 0.0
      %1669 = vmatprep.subr.mxu0 0.0
      %1670 = vmatpush2.msra.mxu0 0.0
      %1671 = vmatprep.mubr.f32.mxu0 0.0
      %1672 = vmatmul.mubr.f32.gmra.mxu0 %v1472
      %v1673 = vpop.f32.mrf.mxu0
      %v1674 = vadd.f32 %v1605, %v1673
      %v1675 = vpop.f32.mrf.mxu0
      %v1676 = vadd.f32 %v1605, %v1675
      %1677 = vdwg.mxu0
      %1678 = vmatprep.subr.mxu0 %v1596
      %1679 = vmatpush1.msra.mxu0 %v1595
      %1680 = vmatprep.subr.mxu0 %v1588
      %1681 = vmatpush1.msra.mxu0 %v1587
      %1682 = vmatprep.subr.mxu0 %v1580
      %1683 = vmatpush1.msra.mxu0 %v1579
      %1684 = vmatprep.subr.mxu0 %v1572
      %1685 = vmatpush1.msra.mxu0 %v1571
      %1686 = vmatprep.subr.mxu0 %v1564
      %1687 = vmatpush1.msra.mxu0 %v1563
      %1688 = vmatprep.subr.mxu0 %v1556
      %1689 = vmatpush1.msra.mxu0 %v1555
      %1690 = vmatprep.subr.mxu0 %v1548
      %1691 = vmatpush1.msra.mxu0 %v1547
      %1692 = vmatprep.subr.mxu0 %v1540
      %1693 = vmatpush1.msra.mxu0 %v1539
      %1694 = vmatprep.subr.mxu0 %v1532
      %1695 = vmatpush1.msra.mxu0 %v1531
      %1696 = vmatprep.subr.mxu0 %v1524
      %1697 = vmatpush1.msra.mxu0 %v1523
      %1698 = vmatprep.subr.mxu0 %v1516
      %1699 = vmatpush1.msra.mxu0 %v1515
      %1700 = vmatprep.subr.mxu0 %v1508
      %1701 = vmatpush1.msra.mxu0 %v1507
      %1702 = vmatprep.subr.mxu0 %v1500
      %1703 = vmatpush1.msra.mxu0 %v1499
      %1704 = vmatprep.subr.mxu0 %v1492
      %1705 = vmatpush1.msra.mxu0 %v1491
      %1706 = vmatprep.subr.mxu0 %v1484
      %1707 = vmatpush1.msra.mxu0 %v1483
      %1708 = vmatprep.subr.mxu0 %v1476
      %1709 = vmatpush1.msra.mxu0 %v1475
      %1710 = vmatprep.subr.mxu0 0.0
      %1711 = vmatpush2.msra.mxu0 0.0
      %1712 = vmatprep.subr.mxu0 0.0
      %1713 = vmatpush2.msra.mxu0 0.0
      %1714 = vmatprep.subr.mxu0 0.0
      %1715 = vmatpush2.msra.mxu0 0.0
      %1716 = vmatprep.subr.mxu0 0.0
      %1717 = vmatpush2.msra.mxu0 0.0
      %1718 = vmatprep.subr.mxu0 0.0
      %1719 = vmatpush2.msra.mxu0 0.0
      %1720 = vmatprep.subr.mxu0 0.0
      %1721 = vmatpush2.msra.mxu0 0.0
      %1722 = vmatprep.subr.mxu0 0.0
      %1723 = vmatpush2.msra.mxu0 0.0
      %1724 = vmatprep.subr.mxu0 0.0
      %1725 = vmatpush2.msra.mxu0 0.0
      %1726 = vmatprep.subr.mxu0 0.0
      %1727 = vmatpush2.msra.mxu0 0.0
      %1728 = vmatprep.subr.mxu0 0.0
      %1729 = vmatpush2.msra.mxu0 0.0
      %1730 = vmatprep.subr.mxu0 0.0
      %1731 = vmatpush2.msra.mxu0 0.0
      %1732 = vmatprep.subr.mxu0 0.0
      %1733 = vmatpush2.msra.mxu0 0.0
      %1734 = vmatprep.subr.mxu0 0.0
      %1735 = vmatpush2.msra.mxu0 0.0
      %1736 = vmatprep.subr.mxu0 0.0
      %1737 = vmatpush2.msra.mxu0 0.0
      %1738 = vmatprep.subr.mxu0 0.0
      %1739 = vmatpush2.msra.mxu0 0.0
      %1740 = vmatprep.subr.mxu0 0.0
      %1741 = vmatpush2.msra.mxu0 0.0
      %1742 = vmatprep.mubr.f32.mxu0 0.0
      %1743 = vmatmul.mubr.f32.gmra.mxu0 %v1472
      %v1744 = vpop.f32.mrf.mxu0
      %v1745 = vadd.f32 %v1605, %v1744
      %v1746 = vpop.f32.mrf.mxu0
      %v1747 = vadd.f32 %v1605, %v1746
      %1748 = vdwg.mxu0
      %1749 = vmatprep.subr.mxu0 %v1598
      %1750 = vmatpush1.msra.mxu0 %v1597
      %1751 = vmatprep.subr.mxu0 %v1590
      %1752 = vmatpush1.msra.mxu0 %v1589
      %1753 = vmatprep.subr.mxu0 %v1582
      %1754 = vmatpush1.msra.mxu0 %v1581
      %1755 = vmatprep.subr.mxu0 %v1574
      %1756 = vmatpush1.msra.mxu0 %v1573
      %1757 = vmatprep.subr.mxu0 %v1566
      %1758 = vmatpush1.msra.mxu0 %v1565
      %1759 = vmatprep.subr.mxu0 %v1558
      %1760 = vmatpush1.msra.mxu0 %v1557
      %1761 = vmatprep.subr.mxu0 %v1550
      %1762 = vmatpush1.msra.mxu0 %v1549
      %1763 = vmatprep.subr.mxu0 %v1542
      %1764 = vmatpush1.msra.mxu0 %v1541
      %1765 = vmatprep.subr.mxu0 %v1534
      %1766 = vmatpush1.msra.mxu0 %v1533
      %1767 = vmatprep.subr.mxu0 %v1526
      %1768 = vmatpush1.msra.mxu0 %v1525
      %1769 = vmatprep.subr.mxu0 %v1518
      %1770 = vmatpush1.msra.mxu0 %v1517
      %1771 = vmatprep.subr.mxu0 %v1510
      %1772 = vmatpush1.msra.mxu0 %v1509
      %1773 = vmatprep.subr.mxu0 %v1502
      %1774 = vmatpush1.msra.mxu0 %v1501
      %1775 = vmatprep.subr.mxu0 %v1494
      %1776 = vmatpush1.msra.mxu0 %v1493
      %1777 = vmatprep.subr.mxu0 %v1486
      %1778 = vmatpush1.msra.mxu0 %v1485
      %1779 = vmatprep.subr.mxu0 %v1478
      %1780 = vmatpush1.msra.mxu0 %v1477
      %1781 = vmatprep.subr.mxu0 0.0
      %1782 = vmatpush2.msra.mxu0 0.0
      %1783 = vmatprep.subr.mxu0 0.0
      %1784 = vmatpush2.msra.mxu0 0.0
      %1785 = vmatprep.subr.mxu0 0.0
      %1786 = vmatpush2.msra.mxu0 0.0
      %1787 = vmatprep.subr.mxu0 0.0
      %1788 = vmatpush2.msra.mxu0 0.0
      %1789 = vmatprep.subr.mxu0 0.0
      %1790 = vmatpush2.msra.mxu0 0.0
      %1791 = vmatprep.subr.mxu0 0.0
      %1792 = vmatpush2.msra.mxu0 0.0
      %1793 = vmatprep.subr.mxu0 0.0
      %1794 = vmatpush2.msra.mxu0 0.0
      %1795 = vmatprep.subr.mxu0 0.0
      %1796 = vmatpush2.msra.mxu0 0.0
      %1797 = vmatprep.subr.mxu0 0.0
      %1798 = vmatpush2.msra.mxu0 0.0
      %1799 = vmatprep.subr.mxu0 0.0
      %1800 = vmatpush2.msra.mxu0 0.0
      %1801 = vmatprep.subr.mxu0 0.0
      %1802 = vmatpush2.msra.mxu0 0.0
      %1803 = vmatprep.subr.mxu0 0.0
      %1804 = vmatpush2.msra.mxu0 0.0
      %1805 = vmatprep.subr.mxu0 0.0
      %1806 = vmatpush2.msra.mxu0 0.0
      %1807 = vmatprep.subr.mxu0 0.0
      %1808 = vmatpush2.msra.mxu0 0.0
      %1809 = vmatprep.subr.mxu0 0.0
      %1810 = vmatpush2.msra.mxu0 0.0
      %1811 = vmatprep.subr.mxu0 0.0
      %1812 = vmatpush2.msra.mxu0 0.0
      %1813 = vmatprep.mubr.f32.mxu0 0.0
      %1814 = vmatmul.mubr.f32.gmra.mxu0 %v1472
      %v1815 = vpop.f32.mrf.mxu0
      %v1816 = vadd.f32 %v1605, %v1815
      %v1817 = vpop.f32.mrf.mxu0
      %v1818 = vadd.f32 %v1605, %v1817
      %1819 = vdwg.mxu0
      %1820 = vmatprep.subr.mxu0 %v1600
      %1821 = vmatpush1.msra.mxu0 %v1599
      %1822 = vmatprep.subr.mxu0 %v1592
      %1823 = vmatpush1.msra.mxu0 %v1591
      %1824 = vmatprep.subr.mxu0 %v1584
      %1825 = vmatpush1.msra.mxu0 %v1583
      %1826 = vmatprep.subr.mxu0 %v1576
      %1827 = vmatpush1.msra.mxu0 %v1575
      %1828 = vmatprep.subr.mxu0 %v1568
      %1829 = vmatpush1.msra.mxu0 %v1567
      %1830 = vmatprep.subr.mxu0 %v1560
      %1831 = vmatpush1.msra.mxu0 %v1559
      %1832 = vmatprep.subr.mxu0 %v1552
      %1833 = vmatpush1.msra.mxu0 %v1551
      %1834 = vmatprep.subr.mxu0 %v1544
      %1835 = vmatpush1.msra.mxu0 %v1543
      %1836 = vmatprep.subr.mxu0 %v1536
      %1837 = vmatpush1.msra.mxu0 %v1535
      %1838 = vmatprep.subr.mxu0 %v1528
      %1839 = vmatpush1.msra.mxu0 %v1527
      %1840 = vmatprep.subr.mxu0 %v1520
      %1841 = vmatpush1.msra.mxu0 %v1519
      %1842 = vmatprep.subr.mxu0 %v1512
      %1843 = vmatpush1.msra.mxu0 %v1511
      %1844 = vmatprep.subr.mxu0 %v1504
      %1845 = vmatpush1.msra.mxu0 %v1503
      %1846 = vmatprep.subr.mxu0 %v1496
      %1847 = vmatpush1.msra.mxu0 %v1495
      %1848 = vmatprep.subr.mxu0 %v1488
      %1849 = vmatpush1.msra.mxu0 %v1487
      %1850 = vmatprep.subr.mxu0 %v1480
      %1851 = vmatpush1.msra.mxu0 %v1479
      %1852 = vmatprep.subr.mxu0 0.0
      %1853 = vmatpush2.msra.mxu0 0.0
      %1854 = vmatprep.subr.mxu0 0.0
      %1855 = vmatpush2.msra.mxu0 0.0
      %1856 = vmatprep.subr.mxu0 0.0
      %1857 = vmatpush2.msra.mxu0 0.0
      %1858 = vmatprep.subr.mxu0 0.0
      %1859 = vmatpush2.msra.mxu0 0.0
      %1860 = vmatprep.subr.mxu0 0.0
      %1861 = vmatpush2.msra.mxu0 0.0
      %1862 = vmatprep.subr.mxu0 0.0
      %1863 = vmatpush2.msra.mxu0 0.0
      %1864 = vmatprep.subr.mxu0 0.0
      %1865 = vmatpush2.msra.mxu0 0.0
      %1866 = vmatprep.subr.mxu0 0.0
      %1867 = vmatpush2.msra.mxu0 0.0
      %1868 = vmatprep.subr.mxu0 0.0
      %1869 = vmatpush2.msra.mxu0 0.0
      %1870 = vmatprep.subr.mxu0 0.0
      %1871 = vmatpush2.msra.mxu0 0.0
      %1872 = vmatprep.subr.mxu0 0.0
      %1873 = vmatpush2.msra.mxu0 0.0
      %1874 = vmatprep.subr.mxu0 0.0
      %1875 = vmatpush2.msra.mxu0 0.0
      %1876 = vmatprep.subr.mxu0 0.0
      %1877 = vmatpush2.msra.mxu0 0.0
      %1878 = vmatprep.subr.mxu0 0.0
      %1879 = vmatpush2.msra.mxu0 0.0
      %1880 = vmatprep.subr.mxu0 0.0
      %1881 = vmatpush2.msra.mxu0 0.0
      %1882 = vmatprep.subr.mxu0 0.0
      %1883 = vmatpush2.msra.mxu0 0.0
      %1884 = vmatprep.mubr.f32.mxu0 0.0
      %1885 = vmatmul.mubr.f32.gmra.mxu0 %v1472
      %v1886 = vpop.f32.mrf.mxu0
      %v1887 = vadd.f32 %v1605, %v1886
      %v1888 = vpop.f32.mrf.mxu0
      %v1889 = vadd.f32 %v1605, %v1888
      %1890 = vdwg.mxu0
      %v1891 = vld [vmem:[%s5] sm:$0xff]
      %v1893 = vlaneseq
      %v1894 = vshrl.u32 %v1893, 7
      %v1895 = vsub.s32 0, %v1894
      %v1896 = vrot.slane %v1891, %v1895
      %v1897 = vlaneseq
      %v1898 = vshrl.u32 %v1897, 7
      %v1899 = vsub.s32 1, %v1898
      %v1900 = vrot.slane %v1891, %v1899
      %v1901 = vlaneseq
      %v1902 = vshrl.u32 %v1901, 7
      %v1903 = vsub.s32 2, %v1902
      %v1904 = vrot.slane %v1891, %v1903
      %v1905 = vlaneseq
      %v1906 = vshrl.u32 %v1905, 7
      %v1907 = vsub.s32 3, %v1906
      %v1908 = vrot.slane %v1891, %v1907
      %v1909 = vlaneseq
      %v1910 = vshrl.u32 %v1909, 7
      %v1911 = vsub.s32 4, %v1910
      %v1912 = vrot.slane %v1891, %v1911
      %v1913 = vlaneseq
      %v1914 = vshrl.u32 %v1913, 7
      %v1915 = vsub.s32 5, %v1914
      %v1916 = vrot.slane %v1891, %v1915
      %v1917 = vlaneseq
      %v1918 = vshrl.u32 %v1917, 7
      %v1919 = vsub.s32 6, %v1918
      %v1920 = vrot.slane %v1891, %v1919
      %v1921 = vlaneseq
      %v1922 = vshrl.u32 %v1921, 7
      %v1923 = vsub.s32 7, %v1922
      %v1924 = vrot.slane %v1891, %v1923
      %v1933 = vmul.f32 %v1674, %v1896
      %v1934 = vmul.f32 %v1676, %v1900
      %v1935 = vmul.f32 %v1745, %v1904
      %v1936 = vmul.f32 %v1747, %v1908
      %v1937 = vmul.f32 %v1816, %v1912
      %v1938 = vmul.f32 %v1818, %v1916
      %v1939 = vmul.f32 %v1887, %v1920
      %v1940 = vmul.f32 %v1889, %v1924
      %v1941 = vadd.f32 %v1933, %v1934
      %v1942 = vadd.f32 %v1941, %v1935
      %v1943 = vadd.f32 %v1942, %v1936
      %v1944 = vadd.f32 %v1943, %v1937
      %v1945 = vadd.f32 %v1944, %v1938
      %v1946 = vadd.f32 %v1945, %v1939
      %v1947 = vadd.f32 %v1946, %v1940
      %1948 = vadd.xlane.f32.xlu0 %v1947
      %v1949 = vpop.xlane.xlu0 %1948
      %v1950 = vmul.f32 %v1674, %v1674
      %v1951 = vmul.f32 %v1676, %v1676
      %v1952 = vmul.f32 %v1745, %v1745
      %v1953 = vmul.f32 %v1747, %v1747
      %v1954 = vmul.f32 %v1816, %v1816
      %v1955 = vmul.f32 %v1818, %v1818
      %v1956 = vmul.f32 %v1887, %v1887
      %v1957 = vmul.f32 %v1889, %v1889
      %v1958 = vmul.f32 %v1950, %v1896
      %v1959 = vmul.f32 %v1951, %v1900
      %v1960 = vmul.f32 %v1952, %v1904
      %v1961 = vmul.f32 %v1953, %v1908
      %v1962 = vmul.f32 %v1954, %v1912
      %v1963 = vmul.f32 %v1955, %v1916
      %v1964 = vmul.f32 %v1956, %v1920
      %v1965 = vmul.f32 %v1957, %v1924
      %v1966 = vadd.f32 %v1958, %v1959
      %v1967 = vadd.f32 %v1966, %v1960
      %v1968 = vadd.f32 %v1967, %v1961
      %v1969 = vadd.f32 %v1968, %v1962
      %v1970 = vadd.f32 %v1969, %v1963
      %v1971 = vadd.f32 %v1970, %v1964
      %v1972 = vadd.f32 %v1971, %v1965
      %1973 = vadd.xlane.f32.xlu0 %v1972
      %v1974 = vpop.xlane.xlu0 %1973
      %v1975 = vmul.f32 %v1949, 0.001953125
      %v1976 = vmul.f32 %v1974, 0.001953125
      %v1977 = vmul.f32 %v1975, %v1975
      %v1978 = vsub.f32 %v1976, %v1977
      %v1979 = vmax.f32 %v1978, 0.0
      %v1980 = vld [vmem:[%s3] sm:$0xff]
      %v1981 = vadd.f32 %v1979, 1e-05
      %v1982 = vrsqrt.pop %v1981
      %v1983 = vmul.f32 %v1980, %v1982
      %v1984 = vld [vmem:[%s4] sm:$0xff]
      %v1985 = vmul.f32 %v1975, %v1983
      %v1986 = vsub.f32 %v1984, %v1985
      %1988 = vset.pattern.permute.xlu0 0
      %1989 = vperm.xlu0 %1988, %v1983
      %v1990 = vpop.permute.xlu0 %1989
      %v1992 = vmul.f32 %v1674, %v1990
      %v1993 = vmul.f32 %v1676, %v1990
      %v1994 = vmul.f32 %v1745, %v1990
      %v1995 = vmul.f32 %v1747, %v1990
      %v1996 = vmul.f32 %v1816, %v1990
      %v1997 = vmul.f32 %v1818, %v1990
      %v1998 = vmul.f32 %v1887, %v1990
      %v1999 = vmul.f32 %v1889, %v1990
      %2001 = vset.pattern.permute.xlu0 0
      %2002 = vperm.xlu0 %2001, %v1986
      %v2003 = vpop.permute.xlu0 %2002
      %v2005 = vadd.f32 %v1992, %v2003
      %v2006 = vadd.f32 %v1993, %v2003
      %v2007 = vadd.f32 %v1994, %v2003
      %v2008 = vadd.f32 %v1995, %v2003
      %v2009 = vadd.f32 %v1996, %v2003
      %v2010 = vadd.f32 %v1997, %v2003
      %v2011 = vadd.f32 %v1998, %v2003
      %v2012 = vadd.f32 %v1999, %v2003
      %vm2013 = vcmp.ge.f32.partialorder %v2005, 0.0
      %vm2014 = vcmp.ge.f32.partialorder %v2006, 0.0
      %vm2015 = vcmp.ge.f32.partialorder %v2007, 0.0
      %vm2016 = vcmp.ge.f32.partialorder %v2008, 0.0
      %vm2017 = vcmp.ge.f32.partialorder %v2009, 0.0
      %vm2018 = vcmp.ge.f32.partialorder %v2010, 0.0
      %vm2019 = vcmp.ge.f32.partialorder %v2011, 0.0
      %vm2020 = vcmp.ge.f32.partialorder %v2012, 0.0
      %v2021 = vmul.f32 %v2005, 0.01
      %v2022 = vmul.f32 %v2006, 0.01
      %v2023 = vmul.f32 %v2007, 0.01
      %v2024 = vmul.f32 %v2008, 0.01
      %v2025 = vmul.f32 %v2009, 0.01
      %v2026 = vmul.f32 %v2010, 0.01
      %v2027 = vmul.f32 %v2011, 0.01
      %v2028 = vmul.f32 %v2012, 0.01
      %v2029 = vsel %vm2013, %v2005, %v2021
      %v2030 = vsel %vm2014, %v2006, %v2022
      %v2031 = vsel %vm2015, %v2007, %v2023
      %v2032 = vsel %vm2016, %v2008, %v2024
      %v2033 = vsel %vm2017, %v2009, %v2025
      %v2034 = vsel %vm2018, %v2010, %v2026
      %v2035 = vsel %vm2019, %v2011, %v2027
      %v2036 = vsel %vm2020, %v2012, %v2028
      %2037 = vst [vmem:[%s251] sm:$0xff] %v2029
      %2038 = vst [vmem:[%s251 + $0x8] sm:$0xff] %v2030
      %2039 = vst [vmem:[%s251 + $0x10] sm:$0xff] %v2031
      %2040 = vst [vmem:[%s251 + $0x18] sm:$0xff] %v2032
      %2041 = vst [vmem:[%s251 + $0x20] sm:$0xff] %v2033
      %2042 = vst [vmem:[%s251 + $0x28] sm:$0xff] %v2034
      %2043 = vst [vmem:[%s251 + $0x30] sm:$0xff] %v2035
      %2044 = vst [vmem:[%s251 + $0x38] sm:$0xff] %v2036
      %p2045 = scmp.lt.s32.totalorder %s17, 1
      %s2046 = scalar_select %p2045, %s17, 1
      %s2047 = smul.addr %s2046, 8
      %s2048 = smul.addr %s2047, 8
      %s2049 = scalar_lea.vmem %s6, %s2048
      // Predicated region
      $region45: #{conv_block3d_pallas.1} parent=43 // pred_check
        %p2050 = pneg %p166
      $region46: #{conv_block3d_pallas.1} parent=43 // pred_check_branch
        %2052 = sbr.rel (%p2050) target = $region48
      $region47: #{conv_block3d_pallas.1} parent=43 // pred_region
        _
      $region48: #{conv_block3d_pallas.1} parent=43 // pred_fallthru
        _
    $region44: #{conv_block3d_pallas.1} parent=5 // pred_fallthru
      _
    %p2053 = scmp.le.s32.totalorder 2, %s12
    // Predicated region
    $region49: #{conv_block3d_pallas.1} parent=5 // pred_check
      %p2054 = pneg %p2053
    $region50: #{conv_block3d_pallas.1} parent=5 // pred_check_branch
      %2056 = sbr.rel (%p2054) target = $region52
    $region51: #{conv_block3d_pallas.1} parent=5 // pred_region
      %s2057 = ssub.s32 %s12, 2
      // Predicated region
      $region53: #{conv_block3d_pallas.1} parent=51 // pred_check
        %p2058 = pneg %p172
      $region54: #{conv_block3d_pallas.1} parent=51 // pred_check_branch
        %2060 = sbr.rel (%p2058) target = $region56
      $region55: #{conv_block3d_pallas.1} parent=51 // pred_region
        %p2061 = scmp.lt.s32.totalorder %s18, 1
        %s2062 = scalar_select %p2061, %s18, 1
        %s2063 = smul.addr %s2062, 8
        %s2064 = smul.addr %s2063, 8
        %s2065 = scalar_lea.vmem %s6, %s2064
      $region56: #{conv_block3d_pallas.1} parent=51 // pred_fallthru
        _
    $region52: #{conv_block3d_pallas.1} parent=5 // pred_fallthru
      _
  $region6: #{conv_block3d_pallas.1} parent=0 // loop_footer
    %s16 = sadd.s32 1, %s12
  $region7: #{conv_block3d_pallas.1} parent=0 // loop_footer_branch
    %11 = sbr.rel target = $region3
  $region8: #{conv_block3d_pallas.1} parent=0 // loop_exit
    _

</llo_original>
